<compile_context>
chip_gen: v6e
topology: v6e:2x2x1
jax: 0.10.0
libtpu: 0.0.40
codegen_flags: <defaults>
</compile_context>

<pallas_src>
import functools

import jax
import jax.numpy as jnp
from jax.experimental import pallas as pl
from jax.experimental.pallas import tpu as pltpu

_NEG_SENTINEL = -1e30      # value stored in masked logits for non-edges
_EDGE_THRESH = -1e29       # anything above this is a real edge


def _attentive_gru2_kernel(TN, F, H, mxu_dtype,
                           logits_ref,        # (1, TN, N)  pre-masked edge logits (non-edges = -1e30)
                           x_ref,             # (1, N, F)   all node feats of graph b (f32)
                           wp_ref, bp_ref,    # (F, H) mxu_dtype, (1, H) f32      project_node Linear (pre-transposed)
                           wih_ref, bih_ref,  # (H, 3F) mxu_dtype, (1, 3F) f32    GRUCell weight_ih^T, gates [r|z|n]
                           whh_ref, bhh_ref,  # (F, 3F) mxu_dtype, (1, 3F) f32    GRUCell weight_hh^T
                           out_ref,           # (1, TN, F)  f32
                           hv_scratch):       # (N, H) VMEM mxu_dtype, per-graph cached node projection
    i = pl.program_id(1)

    # project_node: hv = Dropout(x) @ Wp + bp  (Dropout -> identity at inference).
    # Hoisted: computed once per graph (i == 0), reused by all node tiles.
    @pl.when(i == 0)
    def _():
        xb = x_ref[0].astype(mxu_dtype)                     # bf16 MXU operand, f32 accumulate
        hv = jnp.dot(xb, wp_ref[...], preferred_element_type=jnp.float32) + bp_ref[...]
        hv_scratch[...] = hv.astype(mxu_dtype)

    # --- edge softmax over the in-edges of the TN destination nodes (all f32 VPU/EUP/XLU) ---
    logits = logits_ref[0]                                  # (TN, N), non-edges = -1e30
    edge = logits > jnp.float32(_EDGE_THRESH)               # recovered adjacency, no HBM mask stream
    zmax = jnp.max(logits, axis=-1, keepdims=True)          # (TN, 1)
    # non-edges underflow to exp(-huge) = 0 when the row has edges; the explicit
    # select keeps isolated rows (all sentinel -> zmax = sentinel) exactly zero.
    e = jnp.where(edge, jnp.exp(logits - zmax), 0.0)        # (TN, N)
    denom = jnp.sum(e, axis=-1, keepdims=True)
    denom = jnp.where(denom == 0.0, 1.0, denom)             # isolated node -> c = 0 (DGL sum over no msgs)
    a = e * pl.reciprocal(denom, approx=True)               # (TN, N)  EUP reciprocal

    # --- message passing: c[v] = sum_u a[v,u] * hv[u]  as an MXU contraction ---
    c = jnp.dot(a.astype(mxu_dtype), hv_scratch[...],
                preferred_element_type=jnp.float32)         # (TN, H) f32
    # ELU; min() keeps exp off the positive branch (no overflow).
    ctx = jnp.where(c > 0, c, jnp.exp(jnp.minimum(c, 0.0)) - 1.0)

    # --- GRUCell(context, node_feats) for the TN destination nodes ---
    start = pl.multiple_of(i * TN, TN)
    h = x_ref[0, pl.ds(start, TN), :]                       # (TN, F) previous node feats, f32
    gi = jnp.dot(ctx.astype(mxu_dtype), wih_ref[...],
                 preferred_element_type=jnp.float32) + bih_ref[...]     # (TN, 3F)
    gh = jnp.dot(h.astype(mxu_dtype), whh_ref[...],
                 preferred_element_type=jnp.float32) + bhh_ref[...]     # (TN, 3F)
    r = jax.nn.sigmoid(gi[:, 0:F] + gh[:, 0:F])
    z = jax.nn.sigmoid(gi[:, F:2 * F] + gh[:, F:2 * F])
    n = jnp.tanh(gi[:, 2 * F:] + r * gh[:, 2 * F:])
    h_new = (1.0 - z) * n + z * h
    out_ref[0] = jax.nn.relu(h_new)                         # (TN, F) lane-dense store (F % 128 == 0)


def mask_edge_logits(edge_logits, adj_mask):
    """Encode non-edges as a -1e30 sentinel so the kernel streams a single (B,N,N) array."""
    return jnp.where(adj_mask > 0, edge_logits, jnp.float32(_NEG_SENTINEL))


def attentive_gru2(node_feats, masked_edge_logits, params, *, tile_n=None, use_bf16=True):
    """node_feats: (B,N,F) f32; masked_edge_logits: (B,N,N) f32 with -1e30 on non-edges.

    params = (wp, bp, wih, bih, whh, bhh), pre-transposed so every Linear is `x @ W + b`.
    """
    B, N, F = node_feats.shape
    wp, bp, wih, bih, whh, bhh = params
    H = wp.shape[1]
    if tile_n is None:
        # Fill the MXU M dimension and amortize per-grid-step overhead: one tile = whole graph.
        # (On v6e/v7x, multiples of 256 are ideal when N is large; 128 saturates v5e.)
        tile_n = N
    assert N % tile_n == 0 and tile_n % 8 == 0
    assert F % 128 == 0, "gate slices gi[:, k*F:(k+1)*F] must stay on (8,128) lane-tile boundaries"

    mxu_dtype = jnp.bfloat16 if use_bf16 else jnp.float32
    wp = wp.astype(mxu_dtype)
    wih = wih.astype(mxu_dtype)
    whh = whh.astype(mxu_dtype)
    bp = bp.astype(jnp.float32)
    bih = bih.astype(jnp.float32)
    bhh = bhh.astype(jnp.float32)

    def const_spec(shape):
        nd = len(shape)
        return pl.BlockSpec(shape, lambda b, i, _nd=nd: (0,) * _nd)

    # Explicit VMEM budget (double-buffered pipeline blocks + scratch), with headroom.
    w_bytes = 2 if use_bf16 else 4
    block_bytes = (
        2 * tile_n * N * 4                                   # masked logits
        + 2 * N * F * 4                                      # node feats
        + 2 * tile_n * F * 4                                 # output
        + 2 * (F * H + H * 3 * F + F * 3 * F) * w_bytes      # weights
        + 2 * (H + 6 * F) * 4                                # biases
        + N * H * w_bytes                                    # hv scratch
    )
    vmem_limit = int(min(100 * 2 ** 20, max(32 * 2 ** 20, 2 * block_bytes)))

    kernel = functools.partial(_attentive_gru2_kernel, tile_n, F, H, mxu_dtype)
    out = pl.pallas_call(
        kernel,
        out_shape=jax.ShapeDtypeStruct((B, N, F), jnp.float32),
        grid_spec=pltpu.PrefetchScalarGridSpec(
            num_scalar_prefetch=0,
            grid=(B, N // tile_n),
            in_specs=[
                pl.BlockSpec((1, tile_n, N), lambda b, i: (b, i, 0)),   # masked logits rows of this dest tile
                pl.BlockSpec((1, N, F), lambda b, i: (b, 0, 0)),        # all node feats (DMA reused over i)
                const_spec((F, H)), const_spec((1, H)),
                const_spec((H, 3 * F)), const_spec((1, 3 * F)),
                const_spec((F, 3 * F)), const_spec((1, 3 * F)),
            ],
            out_specs=pl.BlockSpec((1, tile_n, F), lambda b, i: (b, i, 0)),
            scratch_shapes=[pltpu.VMEM((N, H), mxu_dtype)],
        ),
        # Batch axis "parallel" (v7x megacore); node-tile axis must stay "arbitrary"
        # because hv_scratch is filled at i == 0 and reused by later tiles of the
        # same graph.  With the default tile_n == N there is only one tile per graph.
        compiler_params=pltpu.CompilerParams(
            dimension_semantics=("parallel", "arbitrary"),
            vmem_limit_bytes=vmem_limit),
    )(masked_edge_logits, node_feats, wp, bp, wih, bih, whh, bhh)
    return out


def reference(node_feats, edge_logits, adj_mask, params):
    """Pure-JAX (full f32) mirror of the forward semantics for verification."""
    wp, bp, wih, bih, whh, bhh = params
    F = node_feats.shape[-1]
    masked = jnp.where(adj_mask > 0, edge_logits, jnp.float32(-1e30))
    zmax = jnp.max(masked, axis=-1, keepdims=True)
    e = jnp.exp(masked - zmax) * adj_mask
    denom = jnp.sum(e, axis=-1, keepdims=True)
    a = e / jnp.where(denom == 0.0, 1.0, denom)                       # (B, N, N)
    hv = node_feats @ wp + bp                                         # (B, N, H)
    c = jnp.einsum('bvn,bnh->bvh', a, hv)                             # (B, N, H)
    ctx = jnp.where(c > 0, c, jnp.exp(jnp.minimum(c, 0.0)) - 1.0)     # ELU
    gi = ctx @ wih + bih
    gh = node_feats @ whh + bhh
    r = jax.nn.sigmoid(gi[..., :F] + gh[..., :F])
    z = jax.nn.sigmoid(gi[..., F:2 * F] + gh[..., F:2 * F])
    n = jnp.tanh(gi[..., 2 * F:] + r * gh[..., 2 * F:])
    h_new = (1.0 - z) * n + z * node_feats
    return jax.nn.relu(h_new)


if __name__ == "__main__":
    # Small synthetic batch of dense graphs.  N = 128 so a single node tile fills
    # the MXU M dimension and the softmax lane dimension (128 lanes).
    B, N, F, H = 2, 128, 128, 64     # graphs, nodes/graph, node_feat_size, edge_hidden_size

    key = jax.random.PRNGKey(0)
    ks = jax.random.split(key, 9)

    node_feats = jax.random.normal(ks[0], (B, N, F), dtype=jnp.float32)
    edge_logits = jax.random.normal(ks[1], (B, N, N), dtype=jnp.float32)
    adj_mask = (jax.random.uniform(ks[2], (B, N, N)) < 0.3).astype(jnp.float32)
    adj_mask = jnp.maximum(adj_mask, jnp.eye(N, dtype=jnp.float32)[None])   # self-loops

    # Parameters (stored pre-transposed so every Linear is `x @ W + b`).
    sc = 0.1
    wp = sc * jax.random.normal(ks[3], (F, H), dtype=jnp.float32)            # project_node Linear
    bp = sc * jax.random.normal(ks[4], (1, H), dtype=jnp.float32)
    wih = sc * jax.random.normal(ks[5], (H, 3 * F), dtype=jnp.float32)       # GRU weight_ih^T [r|z|n]
    bih = sc * jax.random.normal(ks[6], (1, 3 * F), dtype=jnp.float32)
    whh = sc * jax.random.normal(ks[7], (F, 3 * F), dtype=jnp.float32)       # GRU weight_hh^T
    bhh = sc * jax.random.normal(ks[8], (1, 3 * F), dtype=jnp.float32)
    params = (wp, bp, wih, bih, whh, bhh)

    # Pre-encode adjacency into the logits stream (single (B,N,N) HBM input).
    masked_logits = mask_edge_logits(edge_logits, adj_mask)

    out = attentive_gru2(node_feats, masked_logits, params)
    out = jax.block_until_ready(out)

    ref = reference(node_feats, edge_logits, adj_mask, params)
    assert out.shape == (B, N, F)
    err = float(jnp.max(jnp.abs(out - ref)))
    # bf16 MXU operands + approx reciprocal vs. a full-f32 reference -> loosened tolerance.
    assert jnp.allclose(out, ref, rtol=3e-2, atol=3e-2), err

    print("KERNEL_OK")
</pallas_src>

<mosaic_0001>
module attributes {stable_mosaic.version = 11 : i64} {
  func.func @_attentive_gru2_kernel(%arg0: i32, %arg1: i32, %arg2: memref<1x128x128xf32, #tpu.memory_space<vmem>>, %arg3: memref<1x128x128xf32, #tpu.memory_space<vmem>>, %arg4: memref<128x64xbf16, #tpu.memory_space<vmem>>, %arg5: memref<1x64xf32, #tpu.memory_space<vmem>>, %arg6: memref<64x384xbf16, #tpu.memory_space<vmem>>, %arg7: memref<1x384xf32, #tpu.memory_space<vmem>>, %arg8: memref<128x384xbf16, #tpu.memory_space<vmem>>, %arg9: memref<1x384xf32, #tpu.memory_space<vmem>>, %arg10: memref<1x128x128xf32, #tpu.memory_space<vmem>>, %arg11: memref<128x64xbf16, #tpu.memory_space<vmem>>) attributes {dimension_semantics = [#tpu.dimension_semantics<parallel>, #tpu.dimension_semantics<arbitrary>], iteration_bounds = array<i64: 2, 1>, scalar_prefetch = 0 : i64, scratch_operands = 1 : i64, tpu.core_type = #tpu.core_type<tc>, window_params = [{transform_indices = @transform_0, window_bounds = array<i64: 1, 128, 128>}, {transform_indices = @transform_1, window_bounds = array<i64: 1, 128, 128>}, {pipeline_mode = #tpu.pipeline_mode<synchronous>, transform_indices = @transform_2, window_bounds = array<i64: 128, 64>}, {pipeline_mode = #tpu.pipeline_mode<synchronous>, transform_indices = @transform_3, window_bounds = array<i64: 1, 64>}, {pipeline_mode = #tpu.pipeline_mode<synchronous>, transform_indices = @transform_4, window_bounds = array<i64: 64, 384>}, {pipeline_mode = #tpu.pipeline_mode<synchronous>, transform_indices = @transform_5, window_bounds = array<i64: 1, 384>}, {pipeline_mode = #tpu.pipeline_mode<synchronous>, transform_indices = @transform_6, window_bounds = array<i64: 128, 384>}, {pipeline_mode = #tpu.pipeline_mode<synchronous>, transform_indices = @transform_7, window_bounds = array<i64: 1, 384>}, {transform_indices = @transform_8, window_bounds = array<i64: 1, 128, 128>}]} {
    %c0_i32 = arith.constant 0 : i32
    %0 = arith.cmpi eq, %arg1, %c0_i32 : i32
    %1 = arith.extui %0 : i1 to i32
    %c0_i32_0 = arith.constant 0 : i32
    %2 = arith.cmpi ne, %1, %c0_i32_0 : i32
    scf.if %2 {
      %c0_33 = arith.constant 0 : index
      %c0_34 = arith.constant 0 : index
      %c0_35 = arith.constant 0 : index
      %82 = vector.load %arg3[%c0_33, %c0_34, %c0_35] : memref<1x128x128xf32, #tpu.memory_space<vmem>>, vector<1x128x128xf32>
      %83 = vector.shape_cast %82 : vector<1x128x128xf32> to vector<128x128xf32>
      %84 = arith.truncf %83 : vector<128x128xf32> to vector<128x128xbf16>
      %c0_36 = arith.constant 0 : index
      %c0_37 = arith.constant 0 : index
      %85 = vector.load %arg4[%c0_36, %c0_37] : memref<128x64xbf16, #tpu.memory_space<vmem>>, vector<128x64xbf16>
      %cst_38 = arith.constant dense<0.000000e+00> : vector<128x64xf32>
      %86 = tpu.matmul %84, %85, %cst_38 {dimension_numbers = #tpu.dot_dimension_numbers<[1], [0], [0], [1], [0, 0, 1, 1], [], []>} : vector<128x128xbf16>, vector<128x64xbf16>, vector<128x64xf32> -> vector<128x64xf32>
      %c0_39 = arith.constant 0 : index
      %c0_40 = arith.constant 0 : index
      %87 = vector.load %arg5[%c0_39, %c0_40] : memref<1x64xf32, #tpu.memory_space<vmem>>, vector<1x64xf32>
      %88 = vector.broadcast %87 : vector<1x64xf32> to vector<128x64xf32>
      %89 = arith.addf %86, %88 : vector<128x64xf32>
      %90 = arith.truncf %89 : vector<128x64xf32> to vector<128x64xbf16>
      %c0_41 = arith.constant 0 : index
      %c0_42 = arith.constant 0 : index
      %91 = vector.load %arg11[%c0_41, %c0_42] : memref<128x64xbf16, #tpu.memory_space<vmem>>, vector<128x64xbf16>
      tpu.vector_store %arg11[%c0_41, %c0_42], %90 {strides = array<i32>} : memref<128x64xbf16, #tpu.memory_space<vmem>>, vector<128x64xbf16>,
    } else {
    }
    %c0 = arith.constant 0 : index
    %c0_1 = arith.constant 0 : index
    %c0_2 = arith.constant 0 : index
    %3 = vector.load %arg2[%c0, %c0_1, %c0_2] : memref<1x128x128xf32, #tpu.memory_space<vmem>>, vector<1x128x128xf32>
    %4 = vector.shape_cast %3 : vector<1x128x128xf32> to vector<128x128xf32>
    %cst = arith.constant -1.000000e+29 : f32
    %5 = vector.broadcast %cst : f32 to vector<128x128xf32>
    %6 = arith.cmpf ogt, %4, %5 : vector<128x128xf32>
    %cst_3 = arith.constant dense<0xFF800000> : vector<128xf32>
    %7 = vector.multi_reduction <maximumf>, %4, %cst_3 [1] : vector<128x128xf32> to vector<128xf32>
    %8 = vector.shape_cast %7 : vector<128xf32> to vector<128x1xf32>
    %9 = vector.broadcast %8 : vector<128x1xf32> to vector<128x128xf32>
    %10 = arith.subf %4, %9 : vector<128x128xf32>
    %11 = math.exp %10 : vector<128x128xf32>
    %cst_4 = arith.constant 0.000000e+00 : f32
    %12 = vector.broadcast %cst_4 : f32 to vector<128x128xf32>
    %13 = arith.select %6, %11, %12 : vector<128x128xi1>, vector<128x128xf32>
    %cst_5 = arith.constant dense<0.000000e+00> : vector<128xf32>
    %14 = vector.multi_reduction <add>, %13, %cst_5 [1] : vector<128x128xf32> to vector<128xf32>
    %15 = vector.shape_cast %14 : vector<128xf32> to vector<128x1xf32>
    %cst_6 = arith.constant 0.000000e+00 : f32
    %16 = vector.broadcast %cst_6 : f32 to vector<128x1xf32>
    %17 = arith.cmpf oeq, %15, %16 : vector<128x1xf32>
    %cst_7 = arith.constant 1.000000e+00 : f32
    %18 = vector.broadcast %cst_7 : f32 to vector<128x1xf32>
    %19 = arith.select %17, %18, %15 : vector<128x1xi1>, vector<128x1xf32>
    %20 = tpu.reciprocal %19 {approx = true} : vector<128x1xf32> -> vector<128x1xf32>
    %21 = vector.broadcast %20 : vector<128x1xf32> to vector<128x128xf32>
    %22 = arith.mulf %13, %21 : vector<128x128xf32>
    %23 = arith.truncf %22 : vector<128x128xf32> to vector<128x128xbf16>
    %c0_8 = arith.constant 0 : index
    %c0_9 = arith.constant 0 : index
    %24 = vector.load %arg11[%c0_8, %c0_9] : memref<128x64xbf16, #tpu.memory_space<vmem>>, vector<128x64xbf16>
    %cst_10 = arith.constant dense<0.000000e+00> : vector<128x64xf32>
    %25 = tpu.matmul %23, %24, %cst_10 {dimension_numbers = #tpu.dot_dimension_numbers<[1], [0], [0], [1], [0, 0, 1, 1], [], []>} : vector<128x128xbf16>, vector<128x64xbf16>, vector<128x64xf32> -> vector<128x64xf32>
    %cst_11 = arith.constant 0.000000e+00 : f32
    %26 = vector.broadcast %cst_11 : f32 to vector<128x64xf32>
    %27 = arith.cmpf ogt, %25, %26 : vector<128x64xf32>
    %cst_12 = arith.constant 0.000000e+00 : f32
    %28 = vector.broadcast %cst_12 : f32 to vector<128x64xf32>
    %29 = arith.minimumf %25, %28 : vector<128x64xf32>
    %30 = math.exp %29 : vector<128x64xf32>
    %cst_13 = arith.constant 1.000000e+00 : f32
    %31 = vector.broadcast %cst_13 : f32 to vector<128x64xf32>
    %32 = arith.subf %30, %31 : vector<128x64xf32>
    %33 = arith.select %27, %25, %32 : vector<128x64xi1>, vector<128x64xf32>
    %c128_i32 = arith.constant 128 : i32
    %34 = arith.muli %arg1, %c128_i32 : i32
    %35 = tpu.assume_multiple %34, 128 : i32
    %c0_14 = arith.constant 0 : index
    %36 = arith.index_cast %35 : i32 to index
    %c0_15 = arith.constant 0 : index
    %37 = vector.load %arg3[%c0_14, %36, %c0_15] : memref<1x128x128xf32, #tpu.memory_space<vmem>>, vector<1x128x128xf32>
    %38 = vector.shape_cast %37 : vector<1x128x128xf32> to vector<128x128xf32>
    %39 = arith.truncf %33 : vector<128x64xf32> to vector<128x64xbf16>
    %c0_16 = arith.constant 0 : index
    %c0_17 = arith.constant 0 : index
    %40 = vector.load %arg6[%c0_16, %c0_17] : memref<64x384xbf16, #tpu.memory_space<vmem>>, vector<64x384xbf16>
    %cst_18 = arith.constant dense<0.000000e+00> : vector<128x384xf32>
    %41 = tpu.matmul %39, %40, %cst_18 {dimension_numbers = #tpu.dot_dimension_numbers<[1], [0], [0], [1], [0, 0, 1, 1], [], []>} : vector<128x64xbf16>, vector<64x384xbf16>, vector<128x384xf32> -> vector<128x384xf32>
    %c0_19 = arith.constant 0 : index
    %c0_20 = arith.constant 0 : index
    %42 = vector.load %arg7[%c0_19, %c0_20] : memref<1x384xf32, #tpu.memory_space<vmem>>, vector<1x384xf32>
    %43 = vector.broadcast %42 : vector<1x384xf32> to vector<128x384xf32>
    %44 = arith.addf %41, %43 : vector<128x384xf32>
    %45 = arith.truncf %38 : vector<128x128xf32> to vector<128x128xbf16>
    %c0_21 = arith.constant 0 : index
    %c0_22 = arith.constant 0 : index
    %46 = vector.load %arg8[%c0_21, %c0_22] : memref<128x384xbf16, #tpu.memory_space<vmem>>, vector<128x384xbf16>
    %cst_23 = arith.constant dense<0.000000e+00> : vector<128x384xf32>
    %47 = tpu.matmul %45, %46, %cst_23 {dimension_numbers = #tpu.dot_dimension_numbers<[1], [0], [0], [1], [0, 0, 1, 1], [], []>} : vector<128x128xbf16>, vector<128x384xbf16>, vector<128x384xf32> -> vector<128x384xf32>
    %c0_24 = arith.constant 0 : index
    %c0_25 = arith.constant 0 : index
    %48 = vector.load %arg9[%c0_24, %c0_25] : memref<1x384xf32, #tpu.memory_space<vmem>>, vector<1x384xf32>
    %49 = vector.broadcast %48 : vector<1x384xf32> to vector<128x384xf32>
    %50 = arith.addf %47, %49 : vector<128x384xf32>
    %51 = vector.extract_strided_slice %44 {offsets = [0, 0], sizes = [128, 128], strides = [1, 1]} : vector<128x384xf32> to vector<128x128xf32>
    %52 = vector.extract_strided_slice %50 {offsets = [0, 0], sizes = [128, 128], strides = [1, 1]} : vector<128x384xf32> to vector<128x128xf32>
    %53 = arith.addf %51, %52 : vector<128x128xf32>
    %54 = arith.negf %53 : vector<128x128xf32>
    %55 = math.exp %54 : vector<128x128xf32>
    %cst_26 = arith.constant 1.000000e+00 : f32
    %56 = vector.broadcast %cst_26 : f32 to vector<128x128xf32>
    %57 = arith.addf %56, %55 : vector<128x128xf32>
    %58 = arith.divf %56, %57 : vector<128x128xf32>
    %59 = vector.extract_strided_slice %44 {offsets = [0, 128], sizes = [128, 128], strides = [1, 1]} : vector<128x384xf32> to vector<128x128xf32>
    %60 = vector.extract_strided_slice %50 {offsets = [0, 128], sizes = [128, 128], strides = [1, 1]} : vector<128x384xf32> to vector<128x128xf32>
    %61 = arith.addf %59, %60 : vector<128x128xf32>
    %62 = arith.negf %61 : vector<128x128xf32>
    %63 = math.exp %62 : vector<128x128xf32>
    %cst_27 = arith.constant 1.000000e+00 : f32
    %64 = vector.broadcast %cst_27 : f32 to vector<128x128xf32>
    %65 = arith.addf %64, %63 : vector<128x128xf32>
    %66 = arith.divf %64, %65 : vector<128x128xf32>
    %67 = vector.extract_strided_slice %44 {offsets = [0, 256], sizes = [128, 128], strides = [1, 1]} : vector<128x384xf32> to vector<128x128xf32>
    %68 = vector.extract_strided_slice %50 {offsets = [0, 256], sizes = [128, 128], strides = [1, 1]} : vector<128x384xf32> to vector<128x128xf32>
    %69 = arith.mulf %58, %68 : vector<128x128xf32>
    %70 = arith.addf %67, %69 : vector<128x128xf32>
    %71 = math.tanh %70 : vector<128x128xf32>
    %cst_28 = arith.constant 1.000000e+00 : f32
    %72 = vector.broadcast %cst_28 : f32 to vector<128x128xf32>
    %73 = arith.subf %72, %66 : vector<128x128xf32>
    %74 = arith.mulf %73, %71 : vector<128x128xf32>
    %75 = arith.mulf %66, %38 : vector<128x128xf32>
    %76 = arith.addf %74, %75 : vector<128x128xf32>
    %cst_29 = arith.constant 0.000000e+00 : f32
    %77 = vector.broadcast %cst_29 : f32 to vector<128x128xf32>
    %78 = arith.maximumf %76, %77 : vector<128x128xf32>
    %c0_30 = arith.constant 0 : index
    %c0_31 = arith.constant 0 : index
    %c0_32 = arith.constant 0 : index
    %79 = vector.load %arg10[%c0_30, %c0_31, %c0_32] : memref<1x128x128xf32, #tpu.memory_space<vmem>>, vector<1x128x128xf32>
    %80 = vector.shape_cast %79 : vector<1x128x128xf32> to vector<128x128xf32>
    %81 = vector.shape_cast %78 : vector<128x128xf32> to vector<1x128x128xf32>
    tpu.vector_store %arg10[%c0_30, %c0_31, %c0_32], %81 {strides = array<i32>} : memref<1x128x128xf32, #tpu.memory_space<vmem>>, vector<1x128x128xf32>,
    return
  }
  func.func @transform_0(%arg0: i32, %arg1: i32) -> (i32, i32, i32) {
    %c0_i32 = arith.constant 0 : i32
    %c0_i32_0 = arith.constant 0 : i32
    return %arg0, %arg1, %c0_i32 : i32, i32, i32
  }
  func.func @transform_1(%arg0: i32, %arg1: i32) -> (i32, i32, i32) {
    %c0_i32 = arith.constant 0 : i32
    %c0_i32_0 = arith.constant 0 : i32
    %c0_i32_1 = arith.constant 0 : i32
    return %arg0, %c0_i32, %c0_i32_0 : i32, i32, i32
  }
  func.func @transform_2(%arg0: i32, %arg1: i32) -> (i32, i32) {
    %c0_i32 = arith.constant 0 : i32
    %c0_i32_0 = arith.constant 0 : i32
    %c0_i32_1 = arith.constant 0 : i32
    return %c0_i32, %c0_i32_0 : i32, i32
  }
  func.func @transform_3(%arg0: i32, %arg1: i32) -> (i32, i32) {
    %c0_i32 = arith.constant 0 : i32
    %c0_i32_0 = arith.constant 0 : i32
    %c0_i32_1 = arith.constant 0 : i32
    return %c0_i32, %c0_i32_0 : i32, i32
  }
  func.func @transform_4(%arg0: i32, %arg1: i32) -> (i32, i32) {
    %c0_i32 = arith.constant 0 : i32
    %c0_i32_0 = arith.constant 0 : i32
    %c0_i32_1 = arith.constant 0 : i32
    return %c0_i32, %c0_i32_0 : i32, i32
  }
  func.func @transform_5(%arg0: i32, %arg1: i32) -> (i32, i32) {
    %c0_i32 = arith.constant 0 : i32
    %c0_i32_0 = arith.constant 0 : i32
    %c0_i32_1 = arith.constant 0 : i32
    return %c0_i32, %c0_i32_0 : i32, i32
  }
  func.func @transform_6(%arg0: i32, %arg1: i32) -> (i32, i32) {
    %c0_i32 = arith.constant 0 : i32
    %c0_i32_0 = arith.constant 0 : i32
    %c0_i32_1 = arith.constant 0 : i32
    return %c0_i32, %c0_i32_0 : i32, i32
  }
  func.func @transform_7(%arg0: i32, %arg1: i32) -> (i32, i32) {
    %c0_i32 = arith.constant 0 : i32
    %c0_i32_0 = arith.constant 0 : i32
    %c0_i32_1 = arith.constant 0 : i32
    return %c0_i32, %c0_i32_0 : i32, i32
  }
  func.func @transform_8(%arg0: i32, %arg1: i32) -> (i32, i32, i32) {
    %c0_i32 = arith.constant 0 : i32
    %c0_i32_0 = arith.constant 0 : i32
    return %arg0, %arg1, %c0_i32 : i32, i32, i32
  }
}

</mosaic_0001>

<llo_original>
// kernel: tpu_custom_call.1
$region0: #{tpu_custom_call.1}
  #allocation0 [shape = 'u32[]', space=smem, size = 0x4, offset = 0x4, fixed_abs, tag = 'smem constant byte address 0x4 - core index']
  #allocation1 [shape = 'u32[144,128]{1,0:T(1,128)}', space=vmem, size = 0x12000, scoped, tag = 'internal scratch']
  #allocation2 [shape = 'bf16[128,64]{1,0:T(8,128)(2,1)}', space=vmem, size = 0x8000, scoped, tag = 'scratch operand']
  %s0 = inlined_call_operand.hbm [shape: f32[2,128,128], index: 0, kind: input, shape index: {}]
  %s1 = inlined_call_operand.hbm [shape: f32[2,128,128], index: 1, kind: input, shape index: {}]
  %s2 = inlined_call_operand.vmem [shape: bf16[128,64], index: 2, kind: input, shape index: {}]
  %s3 = inlined_call_operand.vmem [shape: f32[1,64], index: 3, kind: input, shape index: {}]
  %s4 = inlined_call_operand.vmem [shape: bf16[64,384], index: 4, kind: input, shape index: {}]
  %s5 = inlined_call_operand.vmem [shape: f32[1,384], index: 5, kind: input, shape index: {}]
  %s6 = inlined_call_operand.hbm [shape: bf16[128,384], index: 6, kind: input, shape index: {}]
  %s7 = inlined_call_operand.vmem [shape: f32[1,384], index: 7, kind: input, shape index: {}]
  %s8 = inlined_call_operand.hbm [shape: f32[2,128,128], index: 8, kind: output, shape index: {}]
  %s9 = sld [smem:[#allocation0]]
  $region81: #{tpu_custom_call.1} parent=0
    _
  %s11 = ssub.s32 1, %s9
  %s12 = scalar_select 0, %s11, %s9
  $region1: #{tpu_custom_call.1} parent=0
    #allocation3 [shape = 'u8[131072]{0}', space=vmem, size = 0x20000, scoped, tag = 'input window, operand 0']
    #allocation4 [shape = 's32[2]{0}', space=sflag, size = 0x8, scoped, tag = 'scoped memory for tpu_custom_call.1']
    #allocation5 [shape = 's32[2]{0}', space=sflag, size = 0x8, scoped, tag = 'scoped memory for tpu_custom_call.1']
    #allocation6 [shape = 'u8[131072]{0}', space=vmem, size = 0x20000, scoped, tag = 'input window, operand 1']
    #allocation7 [shape = 's32[2]{0}', space=sflag, size = 0x8, scoped, tag = 'scoped memory for tpu_custom_call.1']
    #allocation8 [shape = 'u8[98304]{0}', space=vmem, size = 0x18000, scoped, tag = 'input window, operand 6, single buffered']
    #allocation9 [shape = 'u8[131072]{0}', space=vmem, size = 0x20000, scoped, tag = 'output window, operand 0']
    %13 = vsyncpa [#allocation4], 0
    %s14 = scalar_lea.sflag [#allocation4], 1
    %15 = vsyncpa %s14, 0
    %16 = vsyncpa [#allocation7], 0
    %s17 = scalar_lea.sflag [#allocation7], 1
    %18 = vsyncpa %s17, 0
    %19 = vsyncpa [#allocation5], 0
    %s20 = scalar_lea.sflag [#allocation5], 1
    %21 = vsyncpa %s20, 0
    loop: start=0, step=1, limit=4
    $region2: #{tpu_custom_call.1} parent=1 // loop_pre_header
      _
    $region3: #{tpu_custom_call.1} parent=1 // loop_header
      %s23 = sphi 0, %s27
      %p24 = scmp.ge.s32.totalorder %s23, 4
      %s30 = sphi 0, %s42
      %s31 = sphi 0, %s38
      %s32 = sphi 0, %s30
      %s33 = sphi 0, %s31
      %s34 = sphi 0, %s32
      %s35 = sphi 0, %s33
      %s47 = sphi 0, %s49
      %s50 = sphi 0, %s47
      %s51 = sphi 0, %s50
      %s67 = sphi 0, %s51
      %s73 = sphi 0, %s75
      %s76 = sphi 0, %s73
      %s77 = sphi 0, %s76
      %s93 = sphi 0, %s77
      %s97 = sphi 0, %s97
      %s99 = sphi 0, %s97
      %s100 = sphi 0, %s99
      %s114 = sphi 0, %s100
      %s118 = sphi 0, %s118
      %s120 = sphi 0, %s118
      %s121 = sphi 0, %s120
      %s135 = sphi 0, %s121
      %s139 = sphi 0, %s139
      %s141 = sphi 0, %s139
      %s142 = sphi 0, %s141
      %s156 = sphi 0, %s142
      %s160 = sphi 0, %s160
      %s162 = sphi 0, %s160
      %s163 = sphi 0, %s162
      %s177 = sphi 0, %s163
      %s181 = sphi 0, %s181
      %s183 = sphi 0, %s181
      %s184 = sphi 0, %s183
      %s198 = sphi 0, %s184
      %s202 = sphi 0, %s202
      %s204 = sphi 0, %s202
      %s205 = sphi 0, %s204
      %s219 = sphi 0, %s205
      %s227 = sphi 0, %s229
      %s230 = sphi 0, %s227
      %s231 = sphi 0, %s230
      %s247 = sphi 0, %s231
    $region4: #{tpu_custom_call.1} parent=1 // loop_header_branch
      %26 = sbr.rel (%p24) target = $region8
    $region5: #{tpu_custom_call.1} parent=1 // loop_body
      %s28 = ssub.s32 %s23, 1
      %s29 = ssub.s32 %s23, 2
      %s36 = sadd.s32 1, %s31
      %p37 = scmp.ge.s32.totalorder %s36, 1
      %s38 = scalar_select %p37, 0, %s36
      %s39 = sadd.s32 1, %s30
      %s40 = scalar_select %p37, %s39, %s30
      %p41 = scmp.ge.s32.totalorder %s40, 2
      %s42 = scalar_select %p41, 0, %s40
      %s43 = ssub.s32 %s30, %s42
      %s44 = ssub.s32 %s31, %s38
      %s45 = sor.u32 %s43, %s44
      %p46 = scmp.eq.s32.totalorder %s45, 0
      %s48 = sadd.s32 %s47, 1
      %s49 = scalar_select %p46, %s47, %s48
      %p52 = pneg %p46
      %p53 = scmp.eq.s32.totalorder %s23, 1
      %p54 = por %p52, %p53
      %p55 = scmp.ne.s32.totalorder %s47, %s50
      %p56 = scmp.eq.s32.totalorder %s23, 0
      %p57 = por %p55, %p56
      %p58 = scmp.ne.s32.totalorder %s47, %s50
      %p59 = scmp.eq.s32.totalorder %s28, 1
      %p60 = por %p58, %p59
      %p61 = scmp.ne.s32.totalorder %s50, %s51
      %p62 = scmp.eq.s32.totalorder %s28, 0
      %p63 = por %p61, %p62
      %p64 = scmp.ne.s32.totalorder %s50, %s51
      %p65 = scmp.eq.s32.totalorder %s29, 1
      %p66 = por %p64, %p65
      %p68 = scmp.ne.s32.totalorder %s51, %s67
      %p69 = scmp.eq.s32.totalorder %s29, 0
      %p70 = por %p68, %p69
      %s71 = ssub.s32 %s30, %s42
      %p72 = scmp.eq.s32.totalorder %s71, 0
      %s74 = sadd.s32 %s73, 1
      %s75 = scalar_select %p72, %s73, %s74
      %p78 = pneg %p72
      %p79 = scmp.eq.s32.totalorder %s23, 1
      %p80 = por %p78, %p79
      %p81 = scmp.ne.s32.totalorder %s73, %s76
      %p82 = scmp.eq.s32.totalorder %s23, 0
      %p83 = por %p81, %p82
      %p84 = scmp.ne.s32.totalorder %s73, %s76
      %p85 = scmp.eq.s32.totalorder %s28, 1
      %p86 = por %p84, %p85
      %p87 = scmp.ne.s32.totalorder %s76, %s77
      %p88 = scmp.eq.s32.totalorder %s28, 0
      %p89 = por %p87, %p88
      %p90 = scmp.ne.s32.totalorder %s76, %s77
      %p91 = scmp.eq.s32.totalorder %s29, 1
      %p92 = por %p90, %p91
      %p94 = scmp.ne.s32.totalorder %s77, %s93
      %p95 = scmp.eq.s32.totalorder %s29, 0
      %p96 = por %p94, %p95
      %s98 = sadd.s32 %s97, 1
      %p101 = scmp.eq.s32.totalorder %s23, 1
      %p102 = scmp.ne.s32.totalorder %s97, %s99
      %p103 = scmp.eq.s32.totalorder %s23, 0
      %p104 = por %p102, %p103
      %p105 = scmp.ne.s32.totalorder %s97, %s99
      %p106 = scmp.eq.s32.totalorder %s28, 1
      %p107 = por %p105, %p106
      %p108 = scmp.ne.s32.totalorder %s99, %s100
      %p109 = scmp.eq.s32.totalorder %s28, 0
      %p110 = por %p108, %p109
      %p111 = scmp.ne.s32.totalorder %s99, %s100
      %p112 = scmp.eq.s32.totalorder %s29, 1
      %p113 = por %p111, %p112
      %p115 = scmp.ne.s32.totalorder %s100, %s114
      %p116 = scmp.eq.s32.totalorder %s29, 0
      %p117 = por %p115, %p116
      %s119 = sadd.s32 %s118, 1
      %p122 = scmp.eq.s32.totalorder %s23, 1
      %p123 = scmp.ne.s32.totalorder %s118, %s120
      %p124 = scmp.eq.s32.totalorder %s23, 0
      %p125 = por %p123, %p124
      %p126 = scmp.ne.s32.totalorder %s118, %s120
      %p127 = scmp.eq.s32.totalorder %s28, 1
      %p128 = por %p126, %p127
      %p129 = scmp.ne.s32.totalorder %s120, %s121
      %p130 = scmp.eq.s32.totalorder %s28, 0
      %p131 = por %p129, %p130
      %p132 = scmp.ne.s32.totalorder %s120, %s121
      %p133 = scmp.eq.s32.totalorder %s29, 1
      %p134 = por %p132, %p133
      %p136 = scmp.ne.s32.totalorder %s121, %s135
      %p137 = scmp.eq.s32.totalorder %s29, 0
      %p138 = por %p136, %p137
      %s140 = sadd.s32 %s139, 1
      %p143 = scmp.eq.s32.totalorder %s23, 1
      %p144 = scmp.ne.s32.totalorder %s139, %s141
      %p145 = scmp.eq.s32.totalorder %s23, 0
      %p146 = por %p144, %p145
      %p147 = scmp.ne.s32.totalorder %s139, %s141
      %p148 = scmp.eq.s32.totalorder %s28, 1
      %p149 = por %p147, %p148
      %p150 = scmp.ne.s32.totalorder %s141, %s142
      %p151 = scmp.eq.s32.totalorder %s28, 0
      %p152 = por %p150, %p151
      %p153 = scmp.ne.s32.totalorder %s141, %s142
      %p154 = scmp.eq.s32.totalorder %s29, 1
      %p155 = por %p153, %p154
      %p157 = scmp.ne.s32.totalorder %s142, %s156
      %p158 = scmp.eq.s32.totalorder %s29, 0
      %p159 = por %p157, %p158
      %s161 = sadd.s32 %s160, 1
      %p164 = scmp.eq.s32.totalorder %s23, 1
      %p165 = scmp.ne.s32.totalorder %s160, %s162
      %p166 = scmp.eq.s32.totalorder %s23, 0
      %p167 = por %p165, %p166
      %p168 = scmp.ne.s32.totalorder %s160, %s162
      %p169 = scmp.eq.s32.totalorder %s28, 1
      %p170 = por %p168, %p169
      %p171 = scmp.ne.s32.totalorder %s162, %s163
      %p172 = scmp.eq.s32.totalorder %s28, 0
      %p173 = por %p171, %p172
      %p174 = scmp.ne.s32.totalorder %s162, %s163
      %p175 = scmp.eq.s32.totalorder %s29, 1
      %p176 = por %p174, %p175
      %p178 = scmp.ne.s32.totalorder %s163, %s177
      %p179 = scmp.eq.s32.totalorder %s29, 0
      %p180 = por %p178, %p179
      %s182 = sadd.s32 %s181, 1
      %p185 = scmp.eq.s32.totalorder %s23, 1
      %p186 = scmp.ne.s32.totalorder %s181, %s183
      %p187 = scmp.eq.s32.totalorder %s23, 0
      %p188 = por %p186, %p187
      %p189 = scmp.ne.s32.totalorder %s181, %s183
      %p190 = scmp.eq.s32.totalorder %s28, 1
      %p191 = por %p189, %p190
      %p192 = scmp.ne.s32.totalorder %s183, %s184
      %p193 = scmp.eq.s32.totalorder %s28, 0
      %p194 = por %p192, %p193
      %p195 = scmp.ne.s32.totalorder %s183, %s184
      %p196 = scmp.eq.s32.totalorder %s29, 1
      %p197 = por %p195, %p196
      %p199 = scmp.ne.s32.totalorder %s184, %s198
      %p200 = scmp.eq.s32.totalorder %s29, 0
      %p201 = por %p199, %p200
      %s203 = sadd.s32 %s202, 1
      %p206 = scmp.eq.s32.totalorder %s23, 1
      %p207 = scmp.ne.s32.totalorder %s202, %s204
      %p208 = scmp.eq.s32.totalorder %s23, 0
      %p209 = por %p207, %p208
      %p210 = scmp.ne.s32.totalorder %s202, %s204
      %p211 = scmp.eq.s32.totalorder %s28, 1
      %p212 = por %p210, %p211
      %p213 = scmp.ne.s32.totalorder %s204, %s205
      %p214 = scmp.eq.s32.totalorder %s28, 0
      %p215 = por %p213, %p214
      %p216 = scmp.ne.s32.totalorder %s204, %s205
      %p217 = scmp.eq.s32.totalorder %s29, 1
      %p218 = por %p216, %p217
      %p220 = scmp.ne.s32.totalorder %s205, %s219
      %p221 = scmp.eq.s32.totalorder %s29, 0
      %p222 = por %p220, %p221
      %s223 = ssub.s32 %s30, %s42
      %s224 = ssub.s32 %s31, %s38
      %s225 = sor.u32 %s223, %s224
      %p226 = scmp.eq.s32.totalorder %s225, 0
      %s228 = sadd.s32 %s227, 1
      %s229 = scalar_select %p226, %s227, %s228
      %p232 = pneg %p226
      %p233 = scmp.eq.s32.totalorder %s23, 1
      %p234 = por %p232, %p233
      %p235 = scmp.ne.s32.totalorder %s227, %s230
      %p236 = scmp.eq.s32.totalorder %s23, 0
      %p237 = por %p235, %p236
      %p238 = scmp.ne.s32.totalorder %s227, %s230
      %p239 = scmp.eq.s32.totalorder %s28, 1
      %p240 = por %p238, %p239
      %p241 = scmp.ne.s32.totalorder %s230, %s231
      %p242 = scmp.eq.s32.totalorder %s28, 0
      %p243 = por %p241, %p242
      %p244 = scmp.ne.s32.totalorder %s230, %s231
      %p245 = scmp.eq.s32.totalorder %s29, 1
      %p246 = por %p244, %p245
      %p248 = scmp.ne.s32.totalorder %s231, %s247
      %p249 = scmp.eq.s32.totalorder %s29, 0
      %p250 = por %p248, %p249
      %p251 = scmp.le.s32.totalorder 1, %s23
      %p252 = scmp.lt.s32.totalorder %s23, 3
      %p253 = pnand %p251, %p252
      %p254 = pneg %p253
      // Predicated region
      $region9: #{tpu_custom_call.1} parent=5 // pred_check
        _
      $region10: #{tpu_custom_call.1} parent=5 // pred_check_branch
        %256 = sbr.rel (%p253) target = $region12
      $region11: #{tpu_custom_call.1} parent=5 // pred_region
        %s257 = ssub.s32 %s23, 1
        // Predicated region
        $region13: #{tpu_custom_call.1} parent=11 // pred_check
          %p258 = pneg %p110
        $region14: #{tpu_custom_call.1} parent=11 // pred_check_branch
          %260 = sbr.rel (%p258) target = $region16
        $region15: #{tpu_custom_call.1} parent=11 // pred_region
          _
        $region16: #{tpu_custom_call.1} parent=11 // pred_fallthru
          _
        // Predicated region
        $region17: #{tpu_custom_call.1} parent=11 // pred_check
          %p261 = pneg %p131
        $region18: #{tpu_custom_call.1} parent=11 // pred_check_branch
          %263 = sbr.rel (%p261) target = $region20
        $region19: #{tpu_custom_call.1} parent=11 // pred_region
          _
        $region20: #{tpu_custom_call.1} parent=11 // pred_fallthru
          _
        // Predicated region
        $region21: #{tpu_custom_call.1} parent=11 // pred_check
          %p264 = pneg %p152
        $region22: #{tpu_custom_call.1} parent=11 // pred_check_branch
          %266 = sbr.rel (%p264) target = $region24
        $region23: #{tpu_custom_call.1} parent=11 // pred_region
          _
        $region24: #{tpu_custom_call.1} parent=11 // pred_fallthru
          _
        // Predicated region
        $region25: #{tpu_custom_call.1} parent=11 // pred_check
          %p267 = pneg %p173
        $region26: #{tpu_custom_call.1} parent=11 // pred_check_branch
          %269 = sbr.rel (%p267) target = $region28
        $region27: #{tpu_custom_call.1} parent=11 // pred_region
          _
        $region28: #{tpu_custom_call.1} parent=11 // pred_fallthru
          _
        // Predicated region
        $region29: #{tpu_custom_call.1} parent=11 // pred_check
          %p270 = pneg %p194
        $region30: #{tpu_custom_call.1} parent=11 // pred_check_branch
          %272 = sbr.rel (%p270) target = $region32
        $region31: #{tpu_custom_call.1} parent=11 // pred_region
          %s274 = ssub.s32 3072, 3072
          %275 = vsyncadd [#allocation7], %s274
          %s276 = sshll.u32 [#allocation8], 4
          %s277 = int_to_ptr.vmem [resolvable:$true] %s276
          %282 = dma.hbm_to_vmem [thread:$0]  %s6, 3072, %s277, [#allocation7], 192, 192, 12
        $region32: #{tpu_custom_call.1} parent=11 // pred_fallthru
          _
        // Predicated region
        $region33: #{tpu_custom_call.1} parent=11 // pred_check
          %p283 = pneg %p215
        $region34: #{tpu_custom_call.1} parent=11 // pred_check_branch
          %285 = sbr.rel (%p283) target = $region36
        $region35: #{tpu_custom_call.1} parent=11 // pred_region
          _
        $region36: #{tpu_custom_call.1} parent=11 // pred_fallthru
          _
      $region12: #{tpu_custom_call.1} parent=5 // pred_fallthru
        _
      %p286 = scmp.lt.s32.totalorder %s23, 2
      // Predicated region
      $region37: #{tpu_custom_call.1} parent=5 // pred_check
        %p287 = pneg %p286
      $region38: #{tpu_custom_call.1} parent=5 // pred_check_branch
        %289 = sbr.rel (%p287) target = $region40
      $region39: #{tpu_custom_call.1} parent=5 // pred_region
        // Predicated region
        $region41: #{tpu_custom_call.1} parent=39 // pred_check
          %p290 = pneg %p57
        $region42: #{tpu_custom_call.1} parent=39 // pred_check_branch
          %292 = sbr.rel (%p290) target = $region44
        $region43: #{tpu_custom_call.1} parent=39 // pred_region
          %s293 = sand.u32 %s47, 1
          %s294 = scalar_lea.sflag [#allocation4], %s293
          %s295 = sand.u32 %s47, 1
          %s296 = smul.addr %s295, 128
          %s297 = scalar_lea.vmem [#allocation3], %s296
          %s298 = smul.u32 16, %s31
          %s300 = ssub.s32 2048, 2048
          %301 = vsyncadd %s294, %s300
          %s302 = smul.addr %s30, 16
          %s303 = sadd.s32 %s298, %s302
          %s304 = smul.addr %s303, 128
          %s305 = scalar_lea.hbm %s0, %s304
          %s306 = sshll.u32 %s297, 4
          %s307 = int_to_ptr.vmem [resolvable:$true] %s306
          %312 = dma.hbm_to_vmem [thread:$0]  %s305, 2048, %s307, %s294, 128, 128, 8
        $region44: #{tpu_custom_call.1} parent=39 // pred_fallthru
          _
        // Predicated region
        $region45: #{tpu_custom_call.1} parent=39 // pred_check
          %p313 = pneg %p83
        $region46: #{tpu_custom_call.1} parent=39 // pred_check_branch
          %315 = sbr.rel (%p313) target = $region48
        $region47: #{tpu_custom_call.1} parent=39 // pred_region
          %s316 = sand.u32 %s23, 1
          %s317 = scalar_lea.sflag [#allocation7], %s316
          %s318 = sand.u32 %s73, 1
          %s319 = smul.addr %s318, 128
          %s320 = scalar_lea.vmem [#allocation6], %s319
          %s322 = ssub.s32 2048, 2048
          %323 = vsyncadd %s317, %s322
          %s324 = smul.addr %s30, 16
          %s325 = smul.addr %s324, 128
          %s326 = scalar_lea.hbm %s1, %s325
          %s327 = sshll.u32 %s320, 4
          %s328 = int_to_ptr.vmem [resolvable:$true] %s327
          %333 = dma.hbm_to_vmem [thread:$0]  %s326, 2048, %s328, %s317, 128, 128, 8
        $region48: #{tpu_custom_call.1} parent=39 // pred_fallthru
          _
      $region40: #{tpu_custom_call.1} parent=5 // pred_fallthru
        _
      %p334 = scmp.le.s32.totalorder 1, %s23
      %p335 = scmp.lt.s32.totalorder %s23, 3
      %p336 = pnand %p334, %p335
      %p337 = pneg %p336
      // Predicated region
      $region49: #{tpu_custom_call.1} parent=5 // pred_check
        _
      $region50: #{tpu_custom_call.1} parent=5 // pred_check_branch
        %339 = sbr.rel (%p336) target = $region52
      $region51: #{tpu_custom_call.1} parent=5 // pred_region
        %s340 = ssub.s32 %s23, 1
        %s341 = sand.u32 %s50, 1
        %s342 = scalar_lea.sflag [#allocation4], %s341
        %s343 = sand.u32 %s50, 1
        %s344 = smul.addr %s343, 128
        %s345 = scalar_lea.vmem [#allocation3], %s344
        // Predicated region
        $region53: #{tpu_custom_call.1} parent=51 // pred_check
          %p346 = pneg %p63
        $region54: #{tpu_custom_call.1} parent=51 // pred_check_branch
          %348 = sbr.rel (%p346) target = $region56
        $region55: #{tpu_custom_call.1} parent=51 // pred_region
          %349 = dma.done %s342, 2048
        $region56: #{tpu_custom_call.1} parent=51 // pred_fallthru
          _
        %s350 = sand.u32 %s28, 1
        %s351 = scalar_lea.sflag [#allocation7], %s350
        %s352 = sand.u32 %s76, 1
        %s353 = smul.addr %s352, 128
        %s354 = scalar_lea.vmem [#allocation6], %s353
        // Predicated region
        $region57: #{tpu_custom_call.1} parent=51 // pred_check
          %p355 = pneg %p89
        $region58: #{tpu_custom_call.1} parent=51 // pred_check_branch
          %357 = sbr.rel (%p355) target = $region60
        $region59: #{tpu_custom_call.1} parent=51 // pred_region
          %358 = dma.done %s351, 2048
        $region60: #{tpu_custom_call.1} parent=51 // pred_fallthru
          _
        // Predicated region
        $region61: #{tpu_custom_call.1} parent=51 // pred_check
          %p359 = pneg %p194
        $region62: #{tpu_custom_call.1} parent=51 // pred_check_branch
          %361 = sbr.rel (%p359) target = $region64
        $region63: #{tpu_custom_call.1} parent=51 // pred_region
          %362 = dma.done [#allocation7], 3072
        $region64: #{tpu_custom_call.1} parent=51 // pred_fallthru
          _
        %s363 = sand.u32 %s50, 1
        %s364 = scalar_lea.sflag [#allocation4], %s363
        %s365 = sand.u32 %s50, 1
        %s366 = smul.addr %s365, 128
        %s367 = scalar_lea.vmem [#allocation3], %s366
        %p368 = pneg %p63
        %p369 = pneg %p60
        %s370 = sand.u32 %s28, 1
        %s371 = scalar_lea.sflag [#allocation7], %s370
        %s372 = sand.u32 %s76, 1
        %s373 = smul.addr %s372, 128
        %s374 = scalar_lea.vmem [#allocation6], %s373
        %p375 = pneg %p89
        %p376 = pneg %p86
        %p377 = pneg %p110
        %p378 = pneg %p107
        %p379 = pneg %p131
        %p380 = pneg %p128
        %p381 = pneg %p152
        %p382 = pneg %p149
        %p383 = pneg %p173
        %p384 = pneg %p170
        %p385 = pneg %p194
        %p386 = pneg %p191
        %p387 = pneg %p215
        %p388 = pneg %p212
        %p389 = pneg %p243
        %p390 = pneg %p240
        %s391 = sand.u32 %s230, 1
        %s392 = scalar_lea.sflag [#allocation5], %s391
        %s393 = sand.u32 %s230, 1
        %s394 = smul.addr %s393, 128
        %s395 = scalar_lea.vmem [#allocation9], %s394
        %s396 = smul.u32 16, %s33
        %s397 = smul.u32 16, %s33
        %p399 = scmp.eq.s32.totalorder %s33, 0
        // Predicated region
        $region65: #{tpu_custom_call.1} parent=51 // pred_check
          %p400 = pneg %p399
        $region66: #{tpu_custom_call.1} parent=51 // pred_check_branch
          %402 = sbr.rel (%p400) target = $region68
        $region67: #{tpu_custom_call.1} parent=51 // pred_region
          %v403 = vld [vmem:[%s354] sm:$0xff]
          %v404 = vld [vmem:[%s354 + $0x8] sm:$0xff]
          %v405 = vld [vmem:[%s354 + $0x10] sm:$0xff]
          %v406 = vld [vmem:[%s354 + $0x18] sm:$0xff]
          %v407 = vld [vmem:[%s354 + $0x20] sm:$0xff]
          %v408 = vld [vmem:[%s354 + $0x28] sm:$0xff]
          %v409 = vld [vmem:[%s354 + $0x30] sm:$0xff]
          %v410 = vld [vmem:[%s354 + $0x38] sm:$0xff]
          %v411 = vld [vmem:[%s354 + $0x40] sm:$0xff]
          %v412 = vld [vmem:[%s354 + $0x48] sm:$0xff]
          %v413 = vld [vmem:[%s354 + $0x50] sm:$0xff]
          %v414 = vld [vmem:[%s354 + $0x58] sm:$0xff]
          %v415 = vld [vmem:[%s354 + $0x60] sm:$0xff]
          %v416 = vld [vmem:[%s354 + $0x68] sm:$0xff]
          %v417 = vld [vmem:[%s354 + $0x70] sm:$0xff]
          %v418 = vld [vmem:[%s354 + $0x78] sm:$0xff]
          %v419 = vpack.c.bf16 %v404, %v403
          %v420 = vpack.c.bf16 %v406, %v405
          %v421 = vpack.c.bf16 %v408, %v407
          %v422 = vpack.c.bf16 %v410, %v409
          %v423 = vpack.c.bf16 %v412, %v411
          %v424 = vpack.c.bf16 %v414, %v413
          %v425 = vpack.c.bf16 %v416, %v415
          %v426 = vpack.c.bf16 %v418, %v417
          %v427 = vld [vmem:[%s2] sm:$0xf]
          %v428 = vld [vmem:[%s2 + $0x4] sm:$0xf]
          %v429 = vld [vmem:[%s2 + $0x8] sm:$0xf]
          %v430 = vld [vmem:[%s2 + $0xc] sm:$0xf]
          %v431 = vld [vmem:[%s2 + $0x10] sm:$0xf]
          %v432 = vld [vmem:[%s2 + $0x14] sm:$0xf]
          %v433 = vld [vmem:[%s2 + $0x18] sm:$0xf]
          %v434 = vld [vmem:[%s2 + $0x1c] sm:$0xf]
          %v435 = vld [vmem:[%s2 + $0x20] sm:$0xf]
          %v436 = vld [vmem:[%s2 + $0x24] sm:$0xf]
          %v437 = vld [vmem:[%s2 + $0x28] sm:$0xf]
          %v438 = vld [vmem:[%s2 + $0x2c] sm:$0xf]
          %v439 = vld [vmem:[%s2 + $0x30] sm:$0xf]
          %v440 = vld [vmem:[%s2 + $0x34] sm:$0xf]
          %v441 = vld [vmem:[%s2 + $0x38] sm:$0xf]
          %v442 = vld [vmem:[%s2 + $0x3c] sm:$0xf]
          %v443 = vld [vmem:[%s3] sm:$0x1]
          %v445 = vlaneseq
          %v446 = vshrl.u32 %v445, 7
          %v447 = vsub.s32 0, %v446
          %v448 = vrot.slane %v443, %v447
          %v466 = vunpack.c.l.b16 %v427
          %v467 = vunpack.c.l.b16 %v428
          %v468 = vunpack.c.l.b16 %v429
          %v469 = vunpack.c.l.b16 %v430
          %v470 = vunpack.c.l.b16 %v431
          %v471 = vunpack.c.l.b16 %v432
          %v472 = vunpack.c.l.b16 %v433
          %v473 = vunpack.c.l.b16 %v434
          %v474 = vunpack.c.l.b16 %v435
          %v475 = vunpack.c.l.b16 %v436
          %v476 = vunpack.c.l.b16 %v437
          %v477 = vunpack.c.l.b16 %v438
          %v478 = vunpack.c.l.b16 %v439
          %v479 = vunpack.c.l.b16 %v440
          %v480 = vunpack.c.l.b16 %v441
          %v481 = vunpack.c.l.b16 %v442
          %v482 = vpack.c.b16 %v467, %v466
          %v483 = vpack.c.b16 %v469, %v468
          %v484 = vpack.c.b16 %v471, %v470
          %v485 = vpack.c.b16 %v473, %v472
          %v486 = vpack.c.b16 %v475, %v474
          %v487 = vpack.c.b16 %v477, %v476
          %v488 = vpack.c.b16 %v479, %v478
          %v489 = vpack.c.b16 %v481, %v480
          %498 = vmatprep.subr.bf16.mxu0 0
          %499 = vmatpush1.bf16.msra.mxu0 %v489
          %500 = vmatprep.subr.bf16.mxu0 0
          %501 = vmatpush1.bf16.msra.mxu0 %v488
          %502 = vmatprep.subr.bf16.mxu0 0
          %503 = vmatpush1.bf16.msra.mxu0 %v487
          %504 = vmatprep.subr.bf16.mxu0 0
          %505 = vmatpush1.bf16.msra.mxu0 %v486
          %506 = vmatprep.subr.bf16.mxu0 0
          %507 = vmatpush1.bf16.msra.mxu0 %v485
          %508 = vmatprep.subr.bf16.mxu0 0
          %509 = vmatpush1.bf16.msra.mxu0 %v484
          %510 = vmatprep.subr.bf16.mxu0 0
          %511 = vmatpush1.bf16.msra.mxu0 %v483
          %512 = vmatprep.subr.bf16.mxu0 0
          %513 = vmatpush1.bf16.msra.mxu0 %v482
          %514 = vmatprep.subr.bf16.mxu0 0
          %515 = vmatpush2.bf16.msra.mxu0 0
          %516 = vmatprep.subr.bf16.mxu0 0
          %517 = vmatpush2.bf16.msra.mxu0 0
          %518 = vmatprep.subr.bf16.mxu0 0
          %519 = vmatpush2.bf16.msra.mxu0 0
          %520 = vmatprep.subr.bf16.mxu0 0
          %521 = vmatpush2.bf16.msra.mxu0 0
          %522 = vmatprep.subr.bf16.mxu0 0
          %523 = vmatpush2.bf16.msra.mxu0 0
          %524 = vmatprep.subr.bf16.mxu0 0
          %525 = vmatpush2.bf16.msra.mxu0 0
          %526 = vmatprep.subr.bf16.mxu0 0
          %527 = vmatpush2.bf16.msra.mxu0 0
          %528 = vmatprep.subr.bf16.mxu0 0
          %529 = vmatpush2.bf16.msra.mxu0 0
          %530 = vmatprep.mubr.bf16.mxu0 0
          %531 = vmatmul.mubr.bf16.gmra.mxu0 %v419
          %v532 = vpop.f32.mrf.mxu0
          %v533 = vadd.f32 %v448, %v532
          %v534 = vpop.f32.mrf.mxu0
          %v535 = vpop.f32.mrf.mxu0
          %v536 = vadd.f32 %v448, %v535
          %v537 = vpop.f32.mrf.mxu0
          %538 = vmatprep.mubr.bf16.mxu0 0
          %539 = vmatmul.mubr.bf16.gmra.mxu0 %v420
          %v540 = vpop.f32.mrf.mxu0
          %v541 = vadd.f32 %v448, %v540
          %v542 = vpop.f32.mrf.mxu0
          %v543 = vpop.f32.mrf.mxu0
          %v544 = vadd.f32 %v448, %v543
          %v545 = vpop.f32.mrf.mxu0
          %546 = vmatprep.mubr.bf16.mxu0 0
          %547 = vmatmul.mubr.bf16.gmra.mxu0 %v421
          %v548 = vpop.f32.mrf.mxu0
          %v549 = vadd.f32 %v448, %v548
          %v550 = vpop.f32.mrf.mxu0
          %v551 = vpop.f32.mrf.mxu0
          %v552 = vadd.f32 %v448, %v551
          %v553 = vpop.f32.mrf.mxu0
          %554 = vmatprep.mubr.bf16.mxu0 0
          %555 = vmatmul.mubr.bf16.gmra.mxu0 %v422
          %v556 = vpop.f32.mrf.mxu0
          %v557 = vadd.f32 %v448, %v556
          %v558 = vpop.f32.mrf.mxu0
          %v559 = vpop.f32.mrf.mxu0
          %v560 = vadd.f32 %v448, %v559
          %v561 = vpop.f32.mrf.mxu0
          %562 = vmatprep.mubr.bf16.mxu0 0
          %563 = vmatmul.mubr.bf16.gmra.mxu0 %v423
          %v564 = vpop.f32.mrf.mxu0
          %v565 = vadd.f32 %v448, %v564
          %v566 = vpop.f32.mrf.mxu0
          %v567 = vpop.f32.mrf.mxu0
          %v568 = vadd.f32 %v448, %v567
          %v569 = vpop.f32.mrf.mxu0
          %570 = vmatprep.mubr.bf16.mxu0 0
          %571 = vmatmul.mubr.bf16.gmra.mxu0 %v424
          %v572 = vpop.f32.mrf.mxu0
          %v573 = vadd.f32 %v448, %v572
          %v574 = vpop.f32.mrf.mxu0
          %v575 = vpop.f32.mrf.mxu0
          %v576 = vadd.f32 %v448, %v575
          %v577 = vpop.f32.mrf.mxu0
          %578 = vmatprep.mubr.bf16.mxu0 0
          %579 = vmatmul.mubr.bf16.gmra.mxu0 %v425
          %v580 = vpop.f32.mrf.mxu0
          %v581 = vadd.f32 %v448, %v580
          %v582 = vpop.f32.mrf.mxu0
          %v583 = vpop.f32.mrf.mxu0
          %v584 = vadd.f32 %v448, %v583
          %v585 = vpop.f32.mrf.mxu0
          %586 = vmatprep.mubr.bf16.mxu0 0
          %587 = vmatmul.mubr.bf16.gmra.mxu0 %v426
          %v588 = vpop.f32.mrf.mxu0
          %v589 = vadd.f32 %v448, %v588
          %v590 = vpop.f32.mrf.mxu0
          %v591 = vpop.f32.mrf.mxu0
          %v592 = vadd.f32 %v448, %v591
          %v593 = vpop.f32.mrf.mxu0
          %594 = vdwg.mxu0
          %v595 = vpack.c.bf16 %v536, %v533
          %v596 = vpack.c.bf16 %v544, %v541
          %v597 = vpack.c.bf16 %v552, %v549
          %v598 = vpack.c.bf16 %v560, %v557
          %v599 = vpack.c.bf16 %v568, %v565
          %v600 = vpack.c.bf16 %v576, %v573
          %v601 = vpack.c.bf16 %v584, %v581
          %v602 = vpack.c.bf16 %v592, %v589
          %v611 = vunpack.c.l.b16 %v595
          %v612 = vunpack.c.h.b16 %v595
          %v613 = vunpack.c.l.b16 %v596
          %v614 = vunpack.c.h.b16 %v596
          %v615 = vunpack.c.l.b16 %v597
          %v616 = vunpack.c.h.b16 %v597
          %v617 = vunpack.c.l.b16 %v598
          %v618 = vunpack.c.h.b16 %v598
          %v619 = vunpack.c.l.b16 %v599
          %v620 = vunpack.c.h.b16 %v599
          %v621 = vunpack.c.l.b16 %v600
          %v622 = vunpack.c.h.b16 %v600
          %v623 = vunpack.c.l.b16 %v601
          %v624 = vunpack.c.h.b16 %v601
          %v625 = vunpack.c.l.b16 %v602
          %v626 = vunpack.c.h.b16 %v602
          %v627 = vpack.c.b16 %v611, %v611
          %v628 = vpack.c.b16 %v612, %v612
          %v629 = vpack.c.b16 %v613, %v613
          %v630 = vpack.c.b16 %v614, %v614
          %v631 = vpack.c.b16 %v615, %v615
          %v632 = vpack.c.b16 %v616, %v616
          %v633 = vpack.c.b16 %v617, %v617
          %v634 = vpack.c.b16 %v618, %v618
          %v635 = vpack.c.b16 %v619, %v619
          %v636 = vpack.c.b16 %v620, %v620
          %v637 = vpack.c.b16 %v621, %v621
          %v638 = vpack.c.b16 %v622, %v622
          %v639 = vpack.c.b16 %v623, %v623
          %v640 = vpack.c.b16 %v624, %v624
          %v641 = vpack.c.b16 %v625, %v625
          %v642 = vpack.c.b16 %v626, %v626
          %vm659 = vcmask 519168
          %660 = vst.msk [vmem:[#allocation2] sm:$0xf] %vm659, %v627
          %661 = vst.msk [vmem:[#allocation2 + $0x4] sm:$0xf] %vm659, %v628
          %662 = vst.msk [vmem:[#allocation2 + $0x8] sm:$0xf] %vm659, %v629
          %663 = vst.msk [vmem:[#allocation2 + $0xc] sm:$0xf] %vm659, %v630
          %664 = vst.msk [vmem:[#allocation2 + $0x10] sm:$0xf] %vm659, %v631
          %665 = vst.msk [vmem:[#allocation2 + $0x14] sm:$0xf] %vm659, %v632
          %666 = vst.msk [vmem:[#allocation2 + $0x18] sm:$0xf] %vm659, %v633
          %667 = vst.msk [vmem:[#allocation2 + $0x1c] sm:$0xf] %vm659, %v634
          %668 = vst.msk [vmem:[#allocation2 + $0x20] sm:$0xf] %vm659, %v635
          %669 = vst.msk [vmem:[#allocation2 + $0x24] sm:$0xf] %vm659, %v636
          %670 = vst.msk [vmem:[#allocation2 + $0x28] sm:$0xf] %vm659, %v637
          %671 = vst.msk [vmem:[#allocation2 + $0x2c] sm:$0xf] %vm659, %v638
          %672 = vst.msk [vmem:[#allocation2 + $0x30] sm:$0xf] %vm659, %v639
          %673 = vst.msk [vmem:[#allocation2 + $0x34] sm:$0xf] %vm659, %v640
          %674 = vst.msk [vmem:[#allocation2 + $0x38] sm:$0xf] %vm659, %v641
          %675 = vst.msk [vmem:[#allocation2 + $0x3c] sm:$0xf] %vm659, %v642
        $region68: #{tpu_custom_call.1} parent=51 // pred_fallthru
          _
        %v676 = vld [vmem:[%s345] sm:$0xff]
        %v677 = vld [vmem:[%s345 + $0x8] sm:$0xff]
        %v678 = vld [vmem:[%s345 + $0x10] sm:$0xff]
        %v679 = vld [vmem:[%s345 + $0x18] sm:$0xff]
        %v680 = vld [vmem:[%s345 + $0x20] sm:$0xff]
        %v681 = vld [vmem:[%s345 + $0x28] sm:$0xff]
        %v682 = vld [vmem:[%s345 + $0x30] sm:$0xff]
        %v683 = vld [vmem:[%s345 + $0x38] sm:$0xff]
        %v684 = vld [vmem:[%s345 + $0x40] sm:$0xff]
        %v685 = vld [vmem:[%s345 + $0x48] sm:$0xff]
        %v686 = vld [vmem:[%s345 + $0x50] sm:$0xff]
        %v687 = vld [vmem:[%s345 + $0x58] sm:$0xff]
        %v688 = vld [vmem:[%s345 + $0x60] sm:$0xff]
        %v689 = vld [vmem:[%s345 + $0x68] sm:$0xff]
        %v690 = vld [vmem:[%s345 + $0x70] sm:$0xff]
        %v691 = vld [vmem:[%s345 + $0x78] sm:$0xff]
        %vm692 = vcmp.gt.f32.partialorder %v676, -1e+29
        %vm693 = vcmp.gt.f32.partialorder %v677, -1e+29
        %vm694 = vcmp.gt.f32.partialorder %v678, -1e+29
        %vm695 = vcmp.gt.f32.partialorder %v679, -1e+29
        %vm696 = vcmp.gt.f32.partialorder %v680, -1e+29
        %vm697 = vcmp.gt.f32.partialorder %v681, -1e+29
        %vm698 = vcmp.gt.f32.partialorder %v682, -1e+29
        %vm699 = vcmp.gt.f32.partialorder %v683, -1e+29
        %vm700 = vcmp.gt.f32.partialorder %v684, -1e+29
        %vm701 = vcmp.gt.f32.partialorder %v685, -1e+29
        %vm702 = vcmp.gt.f32.partialorder %v686, -1e+29
        %vm703 = vcmp.gt.f32.partialorder %v687, -1e+29
        %vm704 = vcmp.gt.f32.partialorder %v688, -1e+29
        %vm705 = vcmp.gt.f32.partialorder %v689, -1e+29
        %vm706 = vcmp.gt.f32.partialorder %v690, -1e+29
        %vm707 = vcmp.gt.f32.partialorder %v691, -1e+29
        %708 = vmax.xlane.f32.xlu0 %v676
        %v709 = vpop.xlane.xlu0 %708
        %710 = vmax.xlane.f32.xlu0 %v677
        %v711 = vpop.xlane.xlu0 %710
        %712 = vmax.xlane.f32.xlu0 %v678
        %v713 = vpop.xlane.xlu0 %712
        %714 = vmax.xlane.f32.xlu0 %v679
        %v715 = vpop.xlane.xlu0 %714
        %716 = vmax.xlane.f32.xlu0 %v680
        %v717 = vpop.xlane.xlu0 %716
        %718 = vmax.xlane.f32.xlu0 %v681
        %v719 = vpop.xlane.xlu0 %718
        %720 = vmax.xlane.f32.xlu0 %v682
        %v721 = vpop.xlane.xlu0 %720
        %722 = vmax.xlane.f32.xlu0 %v683
        %v723 = vpop.xlane.xlu0 %722
        %724 = vmax.xlane.f32.xlu0 %v684
        %v725 = vpop.xlane.xlu0 %724
        %726 = vmax.xlane.f32.xlu0 %v685
        %v727 = vpop.xlane.xlu0 %726
        %728 = vmax.xlane.f32.xlu0 %v686
        %v729 = vpop.xlane.xlu0 %728
        %730 = vmax.xlane.f32.xlu0 %v687
        %v731 = vpop.xlane.xlu0 %730
        %732 = vmax.xlane.f32.xlu0 %v688
        %v733 = vpop.xlane.xlu0 %732
        %734 = vmax.xlane.f32.xlu0 %v689
        %v735 = vpop.xlane.xlu0 %734
        %736 = vmax.xlane.f32.xlu0 %v690
        %v737 = vpop.xlane.xlu0 %736
        %738 = vmax.xlane.f32.xlu0 %v691
        %v739 = vpop.xlane.xlu0 %738
        %v740 = vsub.f32 %v676, %v709
        %v741 = vsub.f32 %v677, %v711
        %v742 = vsub.f32 %v678, %v713
        %v743 = vsub.f32 %v679, %v715
        %v744 = vsub.f32 %v680, %v717
        %v745 = vsub.f32 %v681, %v719
        %v746 = vsub.f32 %v682, %v721
        %v747 = vsub.f32 %v683, %v723
        %v748 = vsub.f32 %v684, %v725
        %v749 = vsub.f32 %v685, %v727
        %v750 = vsub.f32 %v686, %v729
        %v751 = vsub.f32 %v687, %v731
        %v752 = vsub.f32 %v688, %v733
        %v753 = vsub.f32 %v689, %v735
        %v754 = vsub.f32 %v690, %v737
        %v755 = vsub.f32 %v691, %v739
        %v756 = vmul.f32 %v740, 1.442695
        %v757 = vpow.pop %v756
        %v758 = vmul.f32 %v741, 1.442695
        %v759 = vpow.pop %v758
        %v760 = vmul.f32 %v742, 1.442695
        %v761 = vpow.pop %v760
        %v762 = vmul.f32 %v743, 1.442695
        %v763 = vpow.pop %v762
        %v764 = vmul.f32 %v744, 1.442695
        %v765 = vpow.pop %v764
        %v766 = vmul.f32 %v745, 1.442695
        %v767 = vpow.pop %v766
        %v768 = vmul.f32 %v746, 1.442695
        %v769 = vpow.pop %v768
        %v770 = vmul.f32 %v747, 1.442695
        %v771 = vpow.pop %v770
        %v772 = vmul.f32 %v748, 1.442695
        %v773 = vpow.pop %v772
        %v774 = vmul.f32 %v749, 1.442695
        %v775 = vpow.pop %v774
        %v776 = vmul.f32 %v750, 1.442695
        %v777 = vpow.pop %v776
        %v778 = vmul.f32 %v751, 1.442695
        %v779 = vpow.pop %v778
        %v780 = vmul.f32 %v752, 1.442695
        %v781 = vpow.pop %v780
        %v782 = vmul.f32 %v753, 1.442695
        %v783 = vpow.pop %v782
        %v784 = vmul.f32 %v754, 1.442695
        %v785 = vpow.pop %v784
        %v786 = vmul.f32 %v755, 1.442695
        %v787 = vpow.pop %v786
        %v788 = vsel %vm692, %v757, 0.0
        %v789 = vsel %vm693, %v759, 0.0
        %v790 = vsel %vm694, %v761, 0.0
        %v791 = vsel %vm695, %v763, 0.0
        %v792 = vsel %vm696, %v765, 0.0
        %v793 = vsel %vm697, %v767, 0.0
        %v794 = vsel %vm698, %v769, 0.0
        %v795 = vsel %vm699, %v771, 0.0
        %v796 = vsel %vm700, %v773, 0.0
        %v797 = vsel %vm701, %v775, 0.0
        %v798 = vsel %vm702, %v777, 0.0
        %v799 = vsel %vm703, %v779, 0.0
        %v800 = vsel %vm704, %v781, 0.0
        %v801 = vsel %vm705, %v783, 0.0
        %v802 = vsel %vm706, %v785, 0.0
        %v803 = vsel %vm707, %v787, 0.0
        %804 = vadd.xlane.f32.xlu0 %v788
        %v805 = vpop.xlane.xlu0 %804
        %806 = vadd.xlane.f32.xlu0 %v789
        %v807 = vpop.xlane.xlu0 %806
        %808 = vadd.xlane.f32.xlu0 %v790
        %v809 = vpop.xlane.xlu0 %808
        %810 = vadd.xlane.f32.xlu0 %v791
        %v811 = vpop.xlane.xlu0 %810
        %812 = vadd.xlane.f32.xlu0 %v792
        %v813 = vpop.xlane.xlu0 %812
        %814 = vadd.xlane.f32.xlu0 %v793
        %v815 = vpop.xlane.xlu0 %814
        %816 = vadd.xlane.f32.xlu0 %v794
        %v817 = vpop.xlane.xlu0 %816
        %818 = vadd.xlane.f32.xlu0 %v795
        %v819 = vpop.xlane.xlu0 %818
        %820 = vadd.xlane.f32.xlu0 %v796
        %v821 = vpop.xlane.xlu0 %820
        %822 = vadd.xlane.f32.xlu0 %v797
        %v823 = vpop.xlane.xlu0 %822
        %824 = vadd.xlane.f32.xlu0 %v798
        %v825 = vpop.xlane.xlu0 %824
        %826 = vadd.xlane.f32.xlu0 %v799
        %v827 = vpop.xlane.xlu0 %826
        %828 = vadd.xlane.f32.xlu0 %v800
        %v829 = vpop.xlane.xlu0 %828
        %830 = vadd.xlane.f32.xlu0 %v801
        %v831 = vpop.xlane.xlu0 %830
        %832 = vadd.xlane.f32.xlu0 %v802
        %v833 = vpop.xlane.xlu0 %832
        %834 = vadd.xlane.f32.xlu0 %v803
        %v835 = vpop.xlane.xlu0 %834
        %vm836 = vcmp.eq.f32.partialorder %v805, 0.0
        %vm837 = vcmp.eq.f32.partialorder %v807, 0.0
        %vm838 = vcmp.eq.f32.partialorder %v809, 0.0
        %vm839 = vcmp.eq.f32.partialorder %v811, 0.0
        %vm840 = vcmp.eq.f32.partialorder %v813, 0.0
        %vm841 = vcmp.eq.f32.partialorder %v815, 0.0
        %vm842 = vcmp.eq.f32.partialorder %v817, 0.0
        %vm843 = vcmp.eq.f32.partialorder %v819, 0.0
        %vm844 = vcmp.eq.f32.partialorder %v821, 0.0
        %vm845 = vcmp.eq.f32.partialorder %v823, 0.0
        %vm846 = vcmp.eq.f32.partialorder %v825, 0.0
        %vm847 = vcmp.eq.f32.partialorder %v827, 0.0
        %vm848 = vcmp.eq.f32.partialorder %v829, 0.0
        %vm849 = vcmp.eq.f32.partialorder %v831, 0.0
        %vm850 = vcmp.eq.f32.partialorder %v833, 0.0
        %vm851 = vcmp.eq.f32.partialorder %v835, 0.0
        %v852 = vsel %vm836, 1.0, %v805
        %v853 = vsel %vm837, 1.0, %v807
        %v854 = vsel %vm838, 1.0, %v809
        %v855 = vsel %vm839, 1.0, %v811
        %v856 = vsel %vm840, 1.0, %v813
        %v857 = vsel %vm841, 1.0, %v815
        %v858 = vsel %vm842, 1.0, %v817
        %v859 = vsel %vm843, 1.0, %v819
        %v860 = vsel %vm844, 1.0, %v821
        %v861 = vsel %vm845, 1.0, %v823
        %v862 = vsel %vm846, 1.0, %v825
        %v863 = vsel %vm847, 1.0, %v827
        %v864 = vsel %vm848, 1.0, %v829
        %v865 = vsel %vm849, 1.0, %v831
        %v866 = vsel %vm850, 1.0, %v833
        %v867 = vsel %vm851, 1.0, %v835
        %v868 = vrcp.pop %v852
        %v869 = vrcp.pop %v853
        %v870 = vrcp.pop %v854
        %v871 = vrcp.pop %v855
        %v872 = vrcp.pop %v856
        %v873 = vrcp.pop %v857
        %v874 = vrcp.pop %v858
        %v875 = vrcp.pop %v859
        %v876 = vrcp.pop %v860
        %v877 = vrcp.pop %v861
        %v878 = vrcp.pop %v862
        %v879 = vrcp.pop %v863
        %v880 = vrcp.pop %v864
        %v881 = vrcp.pop %v865
        %v882 = vrcp.pop %v866
        %v883 = vrcp.pop %v867
        %v884 = vmul.f32 %v788, %v868
        %v885 = vmul.f32 %v789, %v869
        %v886 = vmul.f32 %v790, %v870
        %v887 = vmul.f32 %v791, %v871
        %v888 = vmul.f32 %v792, %v872
        %v889 = vmul.f32 %v793, %v873
        %v890 = vmul.f32 %v794, %v874
        %v891 = vmul.f32 %v795, %v875
        %v892 = vmul.f32 %v796, %v876
        %v893 = vmul.f32 %v797, %v877
        %v894 = vmul.f32 %v798, %v878
        %v895 = vmul.f32 %v799, %v879
        %v896 = vmul.f32 %v800, %v880
        %v897 = vmul.f32 %v801, %v881
        %v898 = vmul.f32 %v802, %v882
        %v899 = vmul.f32 %v803, %v883
        %v900 = vpack.c.bf16 %v885, %v884
        %v901 = vpack.c.bf16 %v887, %v886
        %v902 = vpack.c.bf16 %v889, %v888
        %v903 = vpack.c.bf16 %v891, %v890
        %v904 = vpack.c.bf16 %v893, %v892
        %v905 = vpack.c.bf16 %v895, %v894
        %v906 = vpack.c.bf16 %v897, %v896
        %v907 = vpack.c.bf16 %v899, %v898
        %v908 = vld [vmem:[#allocation2] sm:$0xf]
        %v909 = vld [vmem:[#allocation2 + $0x4] sm:$0xf]
        %v910 = vld [vmem:[#allocation2 + $0x8] sm:$0xf]
        %v911 = vld [vmem:[#allocation2 + $0xc] sm:$0xf]
        %v912 = vld [vmem:[#allocation2 + $0x10] sm:$0xf]
        %v913 = vld [vmem:[#allocation2 + $0x14] sm:$0xf]
        %v914 = vld [vmem:[#allocation2 + $0x18] sm:$0xf]
        %v915 = vld [vmem:[#allocation2 + $0x1c] sm:$0xf]
        %v916 = vld [vmem:[#allocation2 + $0x20] sm:$0xf]
        %v917 = vld [vmem:[#allocation2 + $0x24] sm:$0xf]
        %v918 = vld [vmem:[#allocation2 + $0x28] sm:$0xf]
        %v919 = vld [vmem:[#allocation2 + $0x2c] sm:$0xf]
        %v920 = vld [vmem:[#allocation2 + $0x30] sm:$0xf]
        %v921 = vld [vmem:[#allocation2 + $0x34] sm:$0xf]
        %v922 = vld [vmem:[#allocation2 + $0x38] sm:$0xf]
        %v923 = vld [vmem:[#allocation2 + $0x3c] sm:$0xf]
        %v940 = vunpack.c.l.b16 %v908
        %v941 = vunpack.c.l.b16 %v909
        %v942 = vunpack.c.l.b16 %v910
        %v943 = vunpack.c.l.b16 %v911
        %v944 = vunpack.c.l.b16 %v912
        %v945 = vunpack.c.l.b16 %v913
        %v946 = vunpack.c.l.b16 %v914
        %v947 = vunpack.c.l.b16 %v915
        %v948 = vunpack.c.l.b16 %v916
        %v949 = vunpack.c.l.b16 %v917
        %v950 = vunpack.c.l.b16 %v918
        %v951 = vunpack.c.l.b16 %v919
        %v952 = vunpack.c.l.b16 %v920
        %v953 = vunpack.c.l.b16 %v921
        %v954 = vunpack.c.l.b16 %v922
        %v955 = vunpack.c.l.b16 %v923
        %v956 = vpack.c.b16 %v941, %v940
        %v957 = vpack.c.b16 %v943, %v942
        %v958 = vpack.c.b16 %v945, %v944
        %v959 = vpack.c.b16 %v947, %v946
        %v960 = vpack.c.b16 %v949, %v948
        %v961 = vpack.c.b16 %v951, %v950
        %v962 = vpack.c.b16 %v953, %v952
        %v963 = vpack.c.b16 %v955, %v954
        %972 = vmatprep.subr.bf16.mxu0 0
        %973 = vmatpush1.bf16.msra.mxu0 %v963
        %974 = vmatprep.subr.bf16.mxu0 0
        %975 = vmatpush1.bf16.msra.mxu0 %v962
        %976 = vmatprep.subr.bf16.mxu0 0
        %977 = vmatpush1.bf16.msra.mxu0 %v961
        %978 = vmatprep.subr.bf16.mxu0 0
        %979 = vmatpush1.bf16.msra.mxu0 %v960
        %980 = vmatprep.subr.bf16.mxu0 0
        %981 = vmatpush1.bf16.msra.mxu0 %v959
        %982 = vmatprep.subr.bf16.mxu0 0
        %983 = vmatpush1.bf16.msra.mxu0 %v958
        %984 = vmatprep.subr.bf16.mxu0 0
        %985 = vmatpush1.bf16.msra.mxu0 %v957
        %986 = vmatprep.subr.bf16.mxu0 0
        %987 = vmatpush1.bf16.msra.mxu0 %v956
        %988 = vmatprep.subr.bf16.mxu0 0
        %989 = vmatpush2.bf16.msra.mxu0 0
        %990 = vmatprep.subr.bf16.mxu0 0
        %991 = vmatpush2.bf16.msra.mxu0 0
        %992 = vmatprep.subr.bf16.mxu0 0
        %993 = vmatpush2.bf16.msra.mxu0 0
        %994 = vmatprep.subr.bf16.mxu0 0
        %995 = vmatpush2.bf16.msra.mxu0 0
        %996 = vmatprep.subr.bf16.mxu0 0
        %997 = vmatpush2.bf16.msra.mxu0 0
        %998 = vmatprep.subr.bf16.mxu0 0
        %999 = vmatpush2.bf16.msra.mxu0 0
        %1000 = vmatprep.subr.bf16.mxu0 0
        %1001 = vmatpush2.bf16.msra.mxu0 0
        %1002 = vmatprep.subr.bf16.mxu0 0
        %1003 = vmatpush2.bf16.msra.mxu0 0
        %1004 = vmatprep.mubr.bf16.mxu0 0
        %1005 = vmatmul.mubr.bf16.gmra.mxu0 %v900
        %v1006 = vpop.f32.mrf.mxu0
        %v1007 = vadd.f32 0.0, %v1006
        %v1008 = vpop.f32.mrf.mxu0
        %v1009 = vpop.f32.mrf.mxu0
        %v1010 = vadd.f32 0.0, %v1009
        %v1011 = vpop.f32.mrf.mxu0
        %1012 = vmatprep.mubr.bf16.mxu0 0
        %1013 = vmatmul.mubr.bf16.gmra.mxu0 %v901
        %v1014 = vpop.f32.mrf.mxu0
        %v1015 = vadd.f32 0.0, %v1014
        %v1016 = vpop.f32.mrf.mxu0
        %v1017 = vpop.f32.mrf.mxu0
        %v1018 = vadd.f32 0.0, %v1017
        %v1019 = vpop.f32.mrf.mxu0
        %1020 = vmatprep.mubr.bf16.mxu0 0
        %1021 = vmatmul.mubr.bf16.gmra.mxu0 %v902
        %v1022 = vpop.f32.mrf.mxu0
        %v1023 = vadd.f32 0.0, %v1022
        %v1024 = vpop.f32.mrf.mxu0
        %v1025 = vpop.f32.mrf.mxu0
        %v1026 = vadd.f32 0.0, %v1025
        %v1027 = vpop.f32.mrf.mxu0
        %1028 = vmatprep.mubr.bf16.mxu0 0
        %1029 = vmatmul.mubr.bf16.gmra.mxu0 %v903
        %v1030 = vpop.f32.mrf.mxu0
        %v1031 = vadd.f32 0.0, %v1030
        %v1032 = vpop.f32.mrf.mxu0
        %v1033 = vpop.f32.mrf.mxu0
        %v1034 = vadd.f32 0.0, %v1033
        %v1035 = vpop.f32.mrf.mxu0
        %1036 = vmatprep.mubr.bf16.mxu0 0
        %1037 = vmatmul.mubr.bf16.gmra.mxu0 %v904
        %v1038 = vpop.f32.mrf.mxu0
        %v1039 = vadd.f32 0.0, %v1038
        %v1040 = vpop.f32.mrf.mxu0
        %v1041 = vpop.f32.mrf.mxu0
        %v1042 = vadd.f32 0.0, %v1041
        %v1043 = vpop.f32.mrf.mxu0
        %1044 = vmatprep.mubr.bf16.mxu0 0
        %1045 = vmatmul.mubr.bf16.gmra.mxu0 %v905
        %v1046 = vpop.f32.mrf.mxu0
        %v1047 = vadd.f32 0.0, %v1046
        %v1048 = vpop.f32.mrf.mxu0
        %v1049 = vpop.f32.mrf.mxu0
        %v1050 = vadd.f32 0.0, %v1049
        %v1051 = vpop.f32.mrf.mxu0
        %1052 = vmatprep.mubr.bf16.mxu0 0
        %1053 = vmatmul.mubr.bf16.gmra.mxu0 %v906
        %v1054 = vpop.f32.mrf.mxu0
        %v1055 = vadd.f32 0.0, %v1054
        %v1056 = vpop.f32.mrf.mxu0
        %v1057 = vpop.f32.mrf.mxu0
        %v1058 = vadd.f32 0.0, %v1057
        %v1059 = vpop.f32.mrf.mxu0
        %1060 = vmatprep.mubr.bf16.mxu0 0
        %1061 = vmatmul.mubr.bf16.gmra.mxu0 %v907
        %v1062 = vpop.f32.mrf.mxu0
        %v1063 = vadd.f32 0.0, %v1062
        %v1064 = vpop.f32.mrf.mxu0
        %v1065 = vpop.f32.mrf.mxu0
        %v1066 = vadd.f32 0.0, %v1065
        %v1067 = vpop.f32.mrf.mxu0
        %1068 = vdwg.mxu0
        %vm1069 = vcmp.gt.f32.partialorder %v1007, 0.0
        %vm1070 = vcmp.gt.f32.partialorder %v1010, 0.0
        %vm1071 = vcmp.gt.f32.partialorder %v1015, 0.0
        %vm1072 = vcmp.gt.f32.partialorder %v1018, 0.0
        %vm1073 = vcmp.gt.f32.partialorder %v1023, 0.0
        %vm1074 = vcmp.gt.f32.partialorder %v1026, 0.0
        %vm1075 = vcmp.gt.f32.partialorder %v1031, 0.0
        %vm1076 = vcmp.gt.f32.partialorder %v1034, 0.0
        %vm1077 = vcmp.gt.f32.partialorder %v1039, 0.0
        %vm1078 = vcmp.gt.f32.partialorder %v1042, 0.0
        %vm1079 = vcmp.gt.f32.partialorder %v1047, 0.0
        %vm1080 = vcmp.gt.f32.partialorder %v1050, 0.0
        %vm1081 = vcmp.gt.f32.partialorder %v1055, 0.0
        %vm1082 = vcmp.gt.f32.partialorder %v1058, 0.0
        %vm1083 = vcmp.gt.f32.partialorder %v1063, 0.0
        %vm1084 = vcmp.gt.f32.partialorder %v1066, 0.0
        %v1085 = vmin.f32 %v1007, 0.0
        %v1086 = vmin.f32 %v1010, 0.0
        %v1087 = vmin.f32 %v1015, 0.0
        %v1088 = vmin.f32 %v1018, 0.0
        %v1089 = vmin.f32 %v1023, 0.0
        %v1090 = vmin.f32 %v1026, 0.0
        %v1091 = vmin.f32 %v1031, 0.0
        %v1092 = vmin.f32 %v1034, 0.0
        %v1093 = vmin.f32 %v1039, 0.0
        %v1094 = vmin.f32 %v1042, 0.0
        %v1095 = vmin.f32 %v1047, 0.0
        %v1096 = vmin.f32 %v1050, 0.0
        %v1097 = vmin.f32 %v1055, 0.0
        %v1098 = vmin.f32 %v1058, 0.0
        %v1099 = vmin.f32 %v1063, 0.0
        %v1100 = vmin.f32 %v1066, 0.0
        %v1101 = vmul.f32 %v1085, 1.442695
        %v1102 = vpow.pop %v1101
        %v1103 = vmul.f32 %v1086, 1.442695
        %v1104 = vpow.pop %v1103
        %v1105 = vmul.f32 %v1087, 1.442695
        %v1106 = vpow.pop %v1105
        %v1107 = vmul.f32 %v1088, 1.442695
        %v1108 = vpow.pop %v1107
        %v1109 = vmul.f32 %v1089, 1.442695
        %v1110 = vpow.pop %v1109
        %v1111 = vmul.f32 %v1090, 1.442695
        %v1112 = vpow.pop %v1111
        %v1113 = vmul.f32 %v1091, 1.442695
        %v1114 = vpow.pop %v1113
        %v1115 = vmul.f32 %v1092, 1.442695
        %v1116 = vpow.pop %v1115
        %v1117 = vmul.f32 %v1093, 1.442695
        %v1118 = vpow.pop %v1117
        %v1119 = vmul.f32 %v1094, 1.442695
        %v1120 = vpow.pop %v1119
        %v1121 = vmul.f32 %v1095, 1.442695
        %v1122 = vpow.pop %v1121
        %v1123 = vmul.f32 %v1096, 1.442695
        %v1124 = vpow.pop %v1123
        %v1125 = vmul.f32 %v1097, 1.442695
        %v1126 = vpow.pop %v1125
        %v1127 = vmul.f32 %v1098, 1.442695
        %v1128 = vpow.pop %v1127
        %v1129 = vmul.f32 %v1099, 1.442695
        %v1130 = vpow.pop %v1129
        %v1131 = vmul.f32 %v1100, 1.442695
        %v1132 = vpow.pop %v1131
        %v1133 = vsub.f32 %v1102, 1.0
        %v1134 = vsub.f32 %v1104, 1.0
        %v1135 = vsub.f32 %v1106, 1.0
        %v1136 = vsub.f32 %v1108, 1.0
        %v1137 = vsub.f32 %v1110, 1.0
        %v1138 = vsub.f32 %v1112, 1.0
        %v1139 = vsub.f32 %v1114, 1.0
        %v1140 = vsub.f32 %v1116, 1.0
        %v1141 = vsub.f32 %v1118, 1.0
        %v1142 = vsub.f32 %v1120, 1.0
        %v1143 = vsub.f32 %v1122, 1.0
        %v1144 = vsub.f32 %v1124, 1.0
        %v1145 = vsub.f32 %v1126, 1.0
        %v1146 = vsub.f32 %v1128, 1.0
        %v1147 = vsub.f32 %v1130, 1.0
        %v1148 = vsub.f32 %v1132, 1.0
        %v1149 = vsel %vm1069, %v1007, %v1133
        %v1150 = vsel %vm1070, %v1010, %v1134
        %v1151 = vsel %vm1071, %v1015, %v1135
        %v1152 = vsel %vm1072, %v1018, %v1136
        %v1153 = vsel %vm1073, %v1023, %v1137
        %v1154 = vsel %vm1074, %v1026, %v1138
        %v1155 = vsel %vm1075, %v1031, %v1139
        %v1156 = vsel %vm1076, %v1034, %v1140
        %v1157 = vsel %vm1077, %v1039, %v1141
        %v1158 = vsel %vm1078, %v1042, %v1142
        %v1159 = vsel %vm1079, %v1047, %v1143
        %v1160 = vsel %vm1080, %v1050, %v1144
        %v1161 = vsel %vm1081, %v1055, %v1145
        %v1162 = vsel %vm1082, %v1058, %v1146
        %v1163 = vsel %vm1083, %v1063, %v1147
        %v1164 = vsel %vm1084, %v1066, %v1148
        %s1165 = smul.u32 %s33, 128
        %s1166 = scalar_lea.vmem %s354, %s1165 [#allocation6]
        %v1167 = vld [vmem:[%s1166] sm:$0xff]
        %v1168 = vld [vmem:[%s1166 + $0x8] sm:$0xff]
        %v1169 = vld [vmem:[%s1166 + $0x10] sm:$0xff]
        %v1170 = vld [vmem:[%s1166 + $0x18] sm:$0xff]
        %v1171 = vld [vmem:[%s1166 + $0x20] sm:$0xff]
        %v1172 = vld [vmem:[%s1166 + $0x28] sm:$0xff]
        %v1173 = vld [vmem:[%s1166 + $0x30] sm:$0xff]
        %v1174 = vld [vmem:[%s1166 + $0x38] sm:$0xff]
        %v1175 = vld [vmem:[%s1166 + $0x40] sm:$0xff]
        %v1176 = vld [vmem:[%s1166 + $0x48] sm:$0xff]
        %v1177 = vld [vmem:[%s1166 + $0x50] sm:$0xff]
        %v1178 = vld [vmem:[%s1166 + $0x58] sm:$0xff]
        %v1179 = vld [vmem:[%s1166 + $0x60] sm:$0xff]
        %v1180 = vld [vmem:[%s1166 + $0x68] sm:$0xff]
        %v1181 = vld [vmem:[%s1166 + $0x70] sm:$0xff]
        %v1182 = vld [vmem:[%s1166 + $0x78] sm:$0xff]
        %v1183 = vpack.c.bf16 %v1150, %v1149
        %v1184 = vpack.c.bf16 %v1152, %v1151
        %v1185 = vpack.c.bf16 %v1154, %v1153
        %v1186 = vpack.c.bf16 %v1156, %v1155
        %v1187 = vpack.c.bf16 %v1158, %v1157
        %v1188 = vpack.c.bf16 %v1160, %v1159
        %v1189 = vpack.c.bf16 %v1162, %v1161
        %v1190 = vpack.c.bf16 %v1164, %v1163
        %v1191 = vld [vmem:[%s4] sm:$0xff]
        %v1192 = vld [vmem:[%s4 + $0x8] sm:$0xf]
        %v1193 = vld [vmem:[%s4 + $0xc] sm:$0xff]
        %v1194 = vld [vmem:[%s4 + $0x14] sm:$0xf]
        %v1195 = vld [vmem:[%s4 + $0x18] sm:$0xff]
        %v1196 = vld [vmem:[%s4 + $0x20] sm:$0xf]
        %v1197 = vld [vmem:[%s4 + $0x24] sm:$0xff]
        %v1198 = vld [vmem:[%s4 + $0x2c] sm:$0xf]
        %v1199 = vld [vmem:[%s4 + $0x30] sm:$0xff]
        %v1200 = vld [vmem:[%s4 + $0x38] sm:$0xf]
        %v1201 = vld [vmem:[%s4 + $0x3c] sm:$0xff]
        %v1202 = vld [vmem:[%s4 + $0x44] sm:$0xf]
        %v1203 = vld [vmem:[%s4 + $0x48] sm:$0xff]
        %v1204 = vld [vmem:[%s4 + $0x50] sm:$0xf]
        %v1205 = vld [vmem:[%s4 + $0x54] sm:$0xff]
        %v1206 = vld [vmem:[%s4 + $0x5c] sm:$0xf]
        %v1207 = vld [vmem:[%s5] sm:$0x7]
        %v1209 = vlaneseq
        %v1210 = vshrl.u32 %v1209, 7
        %v1211 = vsub.s32 0, %v1210
        %v1212 = vrot.slane %v1207, %v1211
        %v1213 = vlaneseq
        %v1214 = vshrl.u32 %v1213, 7
        %v1215 = vsub.s32 1, %v1214
        %v1216 = vrot.slane %v1207, %v1215
        %v1217 = vlaneseq
        %v1218 = vshrl.u32 %v1217, 7
        %v1219 = vsub.s32 2, %v1218
        %v1220 = vrot.slane %v1207, %v1219
        %v1240 = vunpack.c.l.b16 %v1191
        %v1241 = vunpack.c.h.b16 %v1191
        %v1242 = vunpack.c.l.b16 %v1192
        %v1243 = vunpack.c.l.b16 %v1193
        %v1244 = vunpack.c.h.b16 %v1193
        %v1245 = vunpack.c.l.b16 %v1194
        %v1246 = vunpack.c.l.b16 %v1195
        %v1247 = vunpack.c.h.b16 %v1195
        %v1248 = vunpack.c.l.b16 %v1196
        %v1249 = vunpack.c.l.b16 %v1197
        %v1250 = vunpack.c.h.b16 %v1197
        %v1251 = vunpack.c.l.b16 %v1198
        %v1252 = vunpack.c.l.b16 %v1199
        %v1253 = vunpack.c.h.b16 %v1199
        %v1254 = vunpack.c.l.b16 %v1200
        %v1255 = vunpack.c.l.b16 %v1201
        %v1256 = vunpack.c.h.b16 %v1201
        %v1257 = vunpack.c.l.b16 %v1202
        %v1258 = vunpack.c.l.b16 %v1203
        %v1259 = vunpack.c.h.b16 %v1203
        %v1260 = vunpack.c.l.b16 %v1204
        %v1261 = vunpack.c.l.b16 %v1205
        %v1262 = vunpack.c.h.b16 %v1205
        %v1263 = vunpack.c.l.b16 %v1206
        %v1264 = vpack.c.b16 %v1243, %v1240
        %v1265 = vpack.c.b16 %v1244, %v1241
        %v1266 = vpack.c.b16 %v1245, %v1242
        %v1267 = vpack.c.b16 %v1249, %v1246
        %v1268 = vpack.c.b16 %v1250, %v1247
        %v1269 = vpack.c.b16 %v1251, %v1248
        %v1270 = vpack.c.b16 %v1255, %v1252
        %v1271 = vpack.c.b16 %v1256, %v1253
        %v1272 = vpack.c.b16 %v1257, %v1254
        %v1273 = vpack.c.b16 %v1261, %v1258
        %v1274 = vpack.c.b16 %v1262, %v1259
        %v1275 = vpack.c.b16 %v1263, %v1260
        %vm1288 = vcmask 523264
        %v1290 = vsel %vm1288, %v1183, 0
        %v1293 = vsel %vm1288, %v1184, 0
        %v1296 = vsel %vm1288, %v1185, 0
        %v1299 = vsel %vm1288, %v1186, 0
        %v1302 = vsel %vm1288, %v1187, 0
        %v1305 = vsel %vm1288, %v1188, 0
        %v1308 = vsel %vm1288, %v1189, 0
        %v1311 = vsel %vm1288, %v1190, 0
        %1313 = vmatprep.subr.bf16.mxu0 0
        %1314 = vmatpush1.bf16.msra.mxu0 0
        %1315 = vmatprep.subr.bf16.mxu0 0
        %1316 = vmatpush1.bf16.msra.mxu0 0
        %1317 = vmatprep.subr.bf16.mxu0 0
        %1318 = vmatpush1.bf16.msra.mxu0 0
        %1319 = vmatprep.subr.bf16.mxu0 0
        %1320 = vmatpush1.bf16.msra.mxu0 0
        %1321 = vmatprep.subr.bf16.mxu0 %v1274
        %1322 = vmatpush1.bf16.msra.mxu0 %v1273
        %1323 = vmatprep.subr.bf16.mxu0 %v1271
        %1324 = vmatpush1.bf16.msra.mxu0 %v1270
        %1325 = vmatprep.subr.bf16.mxu0 %v1268
        %1326 = vmatpush1.bf16.msra.mxu0 %v1267
        %1327 = vmatprep.subr.bf16.mxu0 %v1265
        %1328 = vmatpush1.bf16.msra.mxu0 %v1264
        %1329 = vmatprep.subr.bf16.mxu0 0
        %1330 = vmatpush2.bf16.msra.mxu0 0
        %1331 = vmatprep.subr.bf16.mxu0 0
        %1332 = vmatpush2.bf16.msra.mxu0 0
        %1333 = vmatprep.subr.bf16.mxu0 0
        %1334 = vmatpush2.bf16.msra.mxu0 0
        %1335 = vmatprep.subr.bf16.mxu0 0
        %1336 = vmatpush2.bf16.msra.mxu0 0
        %1337 = vmatprep.subr.bf16.mxu0 0
        %1338 = vmatpush2.bf16.msra.mxu0 0
        %1339 = vmatprep.subr.bf16.mxu0 0
        %1340 = vmatpush2.bf16.msra.mxu0 0
        %1341 = vmatprep.subr.bf16.mxu0 0
        %1342 = vmatpush2.bf16.msra.mxu0 0
        %1343 = vmatprep.subr.bf16.mxu0 0
        %1344 = vmatpush2.bf16.msra.mxu0 0
        %1345 = vmatprep.mubr.bf16.mxu0 0
        %1346 = vmatmul.mubr.bf16.gmra.mxu0 %v1290
        %v1347 = vpop.f32.mrf.mxu0
        %v1348 = vadd.f32 %v1212, %v1347
        %v1349 = vpop.f32.mrf.mxu0
        %v1350 = vadd.f32 %v1216, %v1349
        %v1351 = vpop.f32.mrf.mxu0
        %v1352 = vadd.f32 %v1212, %v1351
        %v1353 = vpop.f32.mrf.mxu0
        %v1354 = vadd.f32 %v1216, %v1353
        %1355 = vmatprep.mubr.bf16.mxu0 0
        %1356 = vmatmul.mubr.bf16.gmra.mxu0 %v1293
        %v1357 = vpop.f32.mrf.mxu0
        %v1358 = vadd.f32 %v1212, %v1357
        %v1359 = vpop.f32.mrf.mxu0
        %v1360 = vadd.f32 %v1216, %v1359
        %v1361 = vpop.f32.mrf.mxu0
        %v1362 = vadd.f32 %v1212, %v1361
        %v1363 = vpop.f32.mrf.mxu0
        %v1364 = vadd.f32 %v1216, %v1363
        %1365 = vmatprep.mubr.bf16.mxu0 0
        %1366 = vmatmul.mubr.bf16.gmra.mxu0 %v1296
        %v1367 = vpop.f32.mrf.mxu0
        %v1368 = vadd.f32 %v1212, %v1367
        %v1369 = vpop.f32.mrf.mxu0
        %v1370 = vadd.f32 %v1216, %v1369
        %v1371 = vpop.f32.mrf.mxu0
        %v1372 = vadd.f32 %v1212, %v1371
        %v1373 = vpop.f32.mrf.mxu0
        %v1374 = vadd.f32 %v1216, %v1373
        %1375 = vmatprep.mubr.bf16.mxu0 0
        %1376 = vmatmul.mubr.bf16.gmra.mxu0 %v1299
        %v1377 = vpop.f32.mrf.mxu0
        %v1378 = vadd.f32 %v1212, %v1377
        %v1379 = vpop.f32.mrf.mxu0
        %v1380 = vadd.f32 %v1216, %v1379
        %v1381 = vpop.f32.mrf.mxu0
        %v1382 = vadd.f32 %v1212, %v1381
        %v1383 = vpop.f32.mrf.mxu0
        %v1384 = vadd.f32 %v1216, %v1383
        %1385 = vmatprep.mubr.bf16.mxu0 0
        %1386 = vmatmul.mubr.bf16.gmra.mxu0 %v1302
        %v1387 = vpop.f32.mrf.mxu0
        %v1388 = vadd.f32 %v1212, %v1387
        %v1389 = vpop.f32.mrf.mxu0
        %v1390 = vadd.f32 %v1216, %v1389
        %v1391 = vpop.f32.mrf.mxu0
        %v1392 = vadd.f32 %v1212, %v1391
        %v1393 = vpop.f32.mrf.mxu0
        %v1394 = vadd.f32 %v1216, %v1393
        %1395 = vmatprep.mubr.bf16.mxu0 0
        %1396 = vmatmul.mubr.bf16.gmra.mxu0 %v1305
        %v1397 = vpop.f32.mrf.mxu0
        %v1398 = vadd.f32 %v1212, %v1397
        %v1399 = vpop.f32.mrf.mxu0
        %v1400 = vadd.f32 %v1216, %v1399
        %v1401 = vpop.f32.mrf.mxu0
        %v1402 = vadd.f32 %v1212, %v1401
        %v1403 = vpop.f32.mrf.mxu0
        %v1404 = vadd.f32 %v1216, %v1403
        %1405 = vmatprep.mubr.bf16.mxu0 0
        %1406 = vmatmul.mubr.bf16.gmra.mxu0 %v1308
        %v1407 = vpop.f32.mrf.mxu0
        %v1408 = vadd.f32 %v1212, %v1407
        %v1409 = vpop.f32.mrf.mxu0
        %v1410 = vadd.f32 %v1216, %v1409
        %v1411 = vpop.f32.mrf.mxu0
        %v1412 = vadd.f32 %v1212, %v1411
        %v1413 = vpop.f32.mrf.mxu0
        %v1414 = vadd.f32 %v1216, %v1413
        %1415 = vmatprep.mubr.bf16.mxu0 0
        %1416 = vmatmul.mubr.bf16.gmra.mxu0 %v1311
        %v1417 = vpop.f32.mrf.mxu0
        %v1418 = vadd.f32 %v1212, %v1417
        %v1419 = vpop.f32.mrf.mxu0
        %v1420 = vadd.f32 %v1216, %v1419
        %v1421 = vpop.f32.mrf.mxu0
        %v1422 = vadd.f32 %v1212, %v1421
        %v1423 = vpop.f32.mrf.mxu0
        %v1424 = vadd.f32 %v1216, %v1423
        %1425 = vdwg.mxu0
        %1426 = vmatprep.subr.bf16.mxu0 0
        %1427 = vmatpush1.bf16.msra.mxu0 0
        %1428 = vmatprep.subr.bf16.mxu0 0
        %1429 = vmatpush1.bf16.msra.mxu0 0
        %1430 = vmatprep.subr.bf16.mxu0 0
        %1431 = vmatpush1.bf16.msra.mxu0 0
        %1432 = vmatprep.subr.bf16.mxu0 0
        %1433 = vmatpush1.bf16.msra.mxu0 0
        %1434 = vmatprep.subr.bf16.mxu0 0
        %1435 = vmatpush1.bf16.msra.mxu0 %v1275
        %1436 = vmatprep.subr.bf16.mxu0 0
        %1437 = vmatpush1.bf16.msra.mxu0 %v1272
        %1438 = vmatprep.subr.bf16.mxu0 0
        %1439 = vmatpush1.bf16.msra.mxu0 %v1269
        %1440 = vmatprep.subr.bf16.mxu0 0
        %1441 = vmatpush1.bf16.msra.mxu0 %v1266
        %1442 = vmatprep.subr.bf16.mxu0 0
        %1443 = vmatpush2.bf16.msra.mxu0 0
        %1444 = vmatprep.subr.bf16.mxu0 0
        %1445 = vmatpush2.bf16.msra.mxu0 0
        %1446 = vmatprep.subr.bf16.mxu0 0
        %1447 = vmatpush2.bf16.msra.mxu0 0
        %1448 = vmatprep.subr.bf16.mxu0 0
        %1449 = vmatpush2.bf16.msra.mxu0 0
        %1450 = vmatprep.subr.bf16.mxu0 0
        %1451 = vmatpush2.bf16.msra.mxu0 0
        %1452 = vmatprep.subr.bf16.mxu0 0
        %1453 = vmatpush2.bf16.msra.mxu0 0
        %1454 = vmatprep.subr.bf16.mxu0 0
        %1455 = vmatpush2.bf16.msra.mxu0 0
        %1456 = vmatprep.subr.bf16.mxu0 0
        %1457 = vmatpush2.bf16.msra.mxu0 0
        %1458 = vmatprep.mubr.bf16.mxu0 0
        %1459 = vmatmul.mubr.bf16.gmra.mxu0 %v1290
        %v1460 = vpop.f32.mrf.mxu0
        %v1461 = vadd.f32 %v1220, %v1460
        %v1462 = vpop.f32.mrf.mxu0
        %v1463 = vpop.f32.mrf.mxu0
        %v1464 = vadd.f32 %v1220, %v1463
        %v1465 = vpop.f32.mrf.mxu0
        %1466 = vmatprep.mubr.bf16.mxu0 0
        %1467 = vmatmul.mubr.bf16.gmra.mxu0 %v1293
        %v1468 = vpop.f32.mrf.mxu0
        %v1469 = vadd.f32 %v1220, %v1468
        %v1470 = vpop.f32.mrf.mxu0
        %v1471 = vpop.f32.mrf.mxu0
        %v1472 = vadd.f32 %v1220, %v1471
        %v1473 = vpop.f32.mrf.mxu0
        %1474 = vmatprep.mubr.bf16.mxu0 0
        %1475 = vmatmul.mubr.bf16.gmra.mxu0 %v1296
        %v1476 = vpop.f32.mrf.mxu0
        %v1477 = vadd.f32 %v1220, %v1476
        %v1478 = vpop.f32.mrf.mxu0
        %v1479 = vpop.f32.mrf.mxu0
        %v1480 = vadd.f32 %v1220, %v1479
        %v1481 = vpop.f32.mrf.mxu0
        %1482 = vmatprep.mubr.bf16.mxu0 0
        %1483 = vmatmul.mubr.bf16.gmra.mxu0 %v1299
        %v1484 = vpop.f32.mrf.mxu0
        %v1485 = vadd.f32 %v1220, %v1484
        %v1486 = vpop.f32.mrf.mxu0
        %v1487 = vpop.f32.mrf.mxu0
        %v1488 = vadd.f32 %v1220, %v1487
        %v1489 = vpop.f32.mrf.mxu0
        %1490 = vmatprep.mubr.bf16.mxu0 0
        %1491 = vmatmul.mubr.bf16.gmra.mxu0 %v1302
        %v1492 = vpop.f32.mrf.mxu0
        %v1493 = vadd.f32 %v1220, %v1492
        %v1494 = vpop.f32.mrf.mxu0
        %v1495 = vpop.f32.mrf.mxu0
        %v1496 = vadd.f32 %v1220, %v1495
        %v1497 = vpop.f32.mrf.mxu0
        %1498 = vmatprep.mubr.bf16.mxu0 0
        %1499 = vmatmul.mubr.bf16.gmra.mxu0 %v1305
        %v1500 = vpop.f32.mrf.mxu0
        %v1501 = vadd.f32 %v1220, %v1500
        %v1502 = vpop.f32.mrf.mxu0
        %v1503 = vpop.f32.mrf.mxu0
        %v1504 = vadd.f32 %v1220, %v1503
        %v1505 = vpop.f32.mrf.mxu0
        %1506 = vmatprep.mubr.bf16.mxu0 0
        %1507 = vmatmul.mubr.bf16.gmra.mxu0 %v1308
        %v1508 = vpop.f32.mrf.mxu0
        %v1509 = vadd.f32 %v1220, %v1508
        %v1510 = vpop.f32.mrf.mxu0
        %v1511 = vpop.f32.mrf.mxu0
        %v1512 = vadd.f32 %v1220, %v1511
        %v1513 = vpop.f32.mrf.mxu0
        %1514 = vmatprep.mubr.bf16.mxu0 0
        %1515 = vmatmul.mubr.bf16.gmra.mxu0 %v1311
        %v1516 = vpop.f32.mrf.mxu0
        %v1517 = vadd.f32 %v1220, %v1516
        %v1518 = vpop.f32.mrf.mxu0
        %v1519 = vpop.f32.mrf.mxu0
        %v1520 = vadd.f32 %v1220, %v1519
        %v1521 = vpop.f32.mrf.mxu0
        %1522 = vdwg.mxu0
        %v1523 = vpack.c.bf16 %v1168, %v1167
        %v1524 = vpack.c.bf16 %v1170, %v1169
        %v1525 = vpack.c.bf16 %v1172, %v1171
        %v1526 = vpack.c.bf16 %v1174, %v1173
        %v1527 = vpack.c.bf16 %v1176, %v1175
        %v1528 = vpack.c.bf16 %v1178, %v1177
        %v1529 = vpack.c.bf16 %v1180, %v1179
        %v1530 = vpack.c.bf16 %v1182, %v1181
        %v1531 = vld [vmem:[#allocation8] sm:$0xff]
        %v1532 = vld [vmem:[#allocation8 + $0x8] sm:$0xf]
        %v1533 = vld [vmem:[#allocation8 + $0xc] sm:$0xff]
        %v1534 = vld [vmem:[#allocation8 + $0x14] sm:$0xf]
        %v1535 = vld [vmem:[#allocation8 + $0x18] sm:$0xff]
        %v1536 = vld [vmem:[#allocation8 + $0x20] sm:$0xf]
        %v1537 = vld [vmem:[#allocation8 + $0x24] sm:$0xff]
        %v1538 = vld [vmem:[#allocation8 + $0x2c] sm:$0xf]
        %v1539 = vld [vmem:[#allocation8 + $0x30] sm:$0xff]
        %v1540 = vld [vmem:[#allocation8 + $0x38] sm:$0xf]
        %v1541 = vld [vmem:[#allocation8 + $0x3c] sm:$0xff]
        %v1542 = vld [vmem:[#allocation8 + $0x44] sm:$0xf]
        %v1543 = vld [vmem:[#allocation8 + $0x48] sm:$0xff]
        %v1544 = vld [vmem:[#allocation8 + $0x50] sm:$0xf]
        %v1545 = vld [vmem:[#allocation8 + $0x54] sm:$0xff]
        %v1546 = vld [vmem:[#allocation8 + $0x5c] sm:$0xf]
        %v1547 = vld [vmem:[#allocation8 + $0x60] sm:$0xff]
        %v1548 = vld [vmem:[#allocation8 + $0x68] sm:$0xf]
        %v1549 = vld [vmem:[#allocation8 + $0x6c] sm:$0xff]
        %v1550 = vld [vmem:[#allocation8 + $0x74] sm:$0xf]
        %v1551 = vld [vmem:[#allocation8 + $0x78] sm:$0xff]
        %v1552 = vld [vmem:[#allocation8 + $0x80] sm:$0xf]
        %v1553 = vld [vmem:[#allocation8 + $0x84] sm:$0xff]
        %v1554 = vld [vmem:[#allocation8 + $0x8c] sm:$0xf]
        %v1555 = vld [vmem:[#allocation8 + $0x90] sm:$0xff]
        %v1556 = vld [vmem:[#allocation8 + $0x98] sm:$0xf]
        %v1557 = vld [vmem:[#allocation8 + $0x9c] sm:$0xff]
        %v1558 = vld [vmem:[#allocation8 + $0xa4] sm:$0xf]
        %v1559 = vld [vmem:[#allocation8 + $0xa8] sm:$0xff]
        %v1560 = vld [vmem:[#allocation8 + $0xb0] sm:$0xf]
        %v1561 = vld [vmem:[#allocation8 + $0xb4] sm:$0xff]
        %v1562 = vld [vmem:[#allocation8 + $0xbc] sm:$0xf]
        %v1563 = vld [vmem:[%s7] sm:$0x7]
        %v1565 = vlaneseq
        %v1566 = vshrl.u32 %v1565, 7
        %v1567 = vsub.s32 0, %v1566
        %v1568 = vrot.slane %v1563, %v1567
        %v1569 = vlaneseq
        %v1570 = vshrl.u32 %v1569, 7
        %v1571 = vsub.s32 1, %v1570
        %v1572 = vrot.slane %v1563, %v1571
        %v1573 = vlaneseq
        %v1574 = vshrl.u32 %v1573, 7
        %v1575 = vsub.s32 2, %v1574
        %v1576 = vrot.slane %v1563, %v1575
        %v1612 = vunpack.c.l.b16 %v1531
        %v1613 = vunpack.c.h.b16 %v1531
        %v1614 = vunpack.c.l.b16 %v1532
        %v1615 = vunpack.c.l.b16 %v1533
        %v1616 = vunpack.c.h.b16 %v1533
        %v1617 = vunpack.c.l.b16 %v1534
        %v1618 = vunpack.c.l.b16 %v1535
        %v1619 = vunpack.c.h.b16 %v1535
        %v1620 = vunpack.c.l.b16 %v1536
        %v1621 = vunpack.c.l.b16 %v1537
        %v1622 = vunpack.c.h.b16 %v1537
        %v1623 = vunpack.c.l.b16 %v1538
        %v1624 = vunpack.c.l.b16 %v1539
        %v1625 = vunpack.c.h.b16 %v1539
        %v1626 = vunpack.c.l.b16 %v1540
        %v1627 = vunpack.c.l.b16 %v1541
        %v1628 = vunpack.c.h.b16 %v1541
        %v1629 = vunpack.c.l.b16 %v1542
        %v1630 = vunpack.c.l.b16 %v1543
        %v1631 = vunpack.c.h.b16 %v1543
        %v1632 = vunpack.c.l.b16 %v1544
        %v1633 = vunpack.c.l.b16 %v1545
        %v1634 = vunpack.c.h.b16 %v1545
        %v1635 = vunpack.c.l.b16 %v1546
        %v1636 = vunpack.c.l.b16 %v1547
        %v1637 = vunpack.c.h.b16 %v1547
        %v1638 = vunpack.c.l.b16 %v1548
        %v1639 = vunpack.c.l.b16 %v1549
        %v1640 = vunpack.c.h.b16 %v1549
        %v1641 = vunpack.c.l.b16 %v1550
        %v1642 = vunpack.c.l.b16 %v1551
        %v1643 = vunpack.c.h.b16 %v1551
        %v1644 = vunpack.c.l.b16 %v1552
        %v1645 = vunpack.c.l.b16 %v1553
        %v1646 = vunpack.c.h.b16 %v1553
        %v1647 = vunpack.c.l.b16 %v1554
        %v1648 = vunpack.c.l.b16 %v1555
        %v1649 = vunpack.c.h.b16 %v1555
        %v1650 = vunpack.c.l.b16 %v1556
        %v1651 = vunpack.c.l.b16 %v1557
        %v1652 = vunpack.c.h.b16 %v1557
        %v1653 = vunpack.c.l.b16 %v1558
        %v1654 = vunpack.c.l.b16 %v1559
        %v1655 = vunpack.c.h.b16 %v1559
        %v1656 = vunpack.c.l.b16 %v1560
        %v1657 = vunpack.c.l.b16 %v1561
        %v1658 = vunpack.c.h.b16 %v1561
        %v1659 = vunpack.c.l.b16 %v1562
        %v1660 = vpack.c.b16 %v1615, %v1612
        %v1661 = vpack.c.b16 %v1616, %v1613
        %v1662 = vpack.c.b16 %v1617, %v1614
        %v1663 = vpack.c.b16 %v1621, %v1618
        %v1664 = vpack.c.b16 %v1622, %v1619
        %v1665 = vpack.c.b16 %v1623, %v1620
        %v1666 = vpack.c.b16 %v1627, %v1624
        %v1667 = vpack.c.b16 %v1628, %v1625
        %v1668 = vpack.c.b16 %v1629, %v1626
        %v1669 = vpack.c.b16 %v1633, %v1630
        %v1670 = vpack.c.b16 %v1634, %v1631
        %v1671 = vpack.c.b16 %v1635, %v1632
        %v1672 = vpack.c.b16 %v1639, %v1636
        %v1673 = vpack.c.b16 %v1640, %v1637
        %v1674 = vpack.c.b16 %v1641, %v1638
        %v1675 = vpack.c.b16 %v1645, %v1642
        %v1676 = vpack.c.b16 %v1646, %v1643
        %v1677 = vpack.c.b16 %v1647, %v1644
        %v1678 = vpack.c.b16 %v1651, %v1648
        %v1679 = vpack.c.b16 %v1652, %v1649
        %v1680 = vpack.c.b16 %v1653, %v1650
        %v1681 = vpack.c.b16 %v1657, %v1654
        %v1682 = vpack.c.b16 %v1658, %v1655
        %v1683 = vpack.c.b16 %v1659, %v1656
        %1708 = vmatprep.subr.bf16.mxu0 %v1682
        %1709 = vmatpush1.bf16.msra.mxu0 %v1681
        %1710 = vmatprep.subr.bf16.mxu0 %v1679
        %1711 = vmatpush1.bf16.msra.mxu0 %v1678
        %1712 = vmatprep.subr.bf16.mxu0 %v1676
        %1713 = vmatpush1.bf16.msra.mxu0 %v1675
        %1714 = vmatprep.subr.bf16.mxu0 %v1673
        %1715 = vmatpush1.bf16.msra.mxu0 %v1672
        %1716 = vmatprep.subr.bf16.mxu0 %v1670
        %1717 = vmatpush1.bf16.msra.mxu0 %v1669
        %1718 = vmatprep.subr.bf16.mxu0 %v1667
        %1719 = vmatpush1.bf16.msra.mxu0 %v1666
        %1720 = vmatprep.subr.bf16.mxu0 %v1664
        %1721 = vmatpush1.bf16.msra.mxu0 %v1663
        %1722 = vmatprep.subr.bf16.mxu0 %v1661
        %1723 = vmatpush1.bf16.msra.mxu0 %v1660
        %1724 = vmatprep.subr.bf16.mxu0 0
        %1725 = vmatpush2.bf16.msra.mxu0 0
        %1726 = vmatprep.subr.bf16.mxu0 0
        %1727 = vmatpush2.bf16.msra.mxu0 0
        %1728 = vmatprep.subr.bf16.mxu0 0
        %1729 = vmatpush2.bf16.msra.mxu0 0
        %1730 = vmatprep.subr.bf16.mxu0 0
        %1731 = vmatpush2.bf16.msra.mxu0 0
        %1732 = vmatprep.subr.bf16.mxu0 0
        %1733 = vmatpush2.bf16.msra.mxu0 0
        %1734 = vmatprep.subr.bf16.mxu0 0
        %1735 = vmatpush2.bf16.msra.mxu0 0
        %1736 = vmatprep.subr.bf16.mxu0 0
        %1737 = vmatpush2.bf16.msra.mxu0 0
        %1738 = vmatprep.subr.bf16.mxu0 0
        %1739 = vmatpush2.bf16.msra.mxu0 0
        %1740 = vmatprep.mubr.bf16.mxu0 0
        %1741 = vmatmul.mubr.bf16.gmra.mxu0 %v1523
        %v1742 = vpop.f32.mrf.mxu0
        %v1743 = vadd.f32 %v1568, %v1742
        %v1744 = vpop.f32.mrf.mxu0
        %v1745 = vadd.f32 %v1572, %v1744
        %v1746 = vpop.f32.mrf.mxu0
        %v1747 = vadd.f32 %v1568, %v1746
        %v1748 = vpop.f32.mrf.mxu0
        %v1749 = vadd.f32 %v1572, %v1748
        %1750 = vmatprep.mubr.bf16.mxu0 0
        %1751 = vmatmul.mubr.bf16.gmra.mxu0 %v1524
        %v1752 = vpop.f32.mrf.mxu0
        %v1753 = vadd.f32 %v1568, %v1752
        %v1754 = vpop.f32.mrf.mxu0
        %v1755 = vadd.f32 %v1572, %v1754
        %v1756 = vpop.f32.mrf.mxu0
        %v1757 = vadd.f32 %v1568, %v1756
        %v1758 = vpop.f32.mrf.mxu0
        %v1759 = vadd.f32 %v1572, %v1758
        %1760 = vmatprep.mubr.bf16.mxu0 0
        %1761 = vmatmul.mubr.bf16.gmra.mxu0 %v1525
        %v1762 = vpop.f32.mrf.mxu0
        %v1763 = vadd.f32 %v1568, %v1762
        %v1764 = vpop.f32.mrf.mxu0
        %v1765 = vadd.f32 %v1572, %v1764
        %v1766 = vpop.f32.mrf.mxu0
        %v1767 = vadd.f32 %v1568, %v1766
        %v1768 = vpop.f32.mrf.mxu0
        %v1769 = vadd.f32 %v1572, %v1768
        %1770 = vmatprep.mubr.bf16.mxu0 0
        %1771 = vmatmul.mubr.bf16.gmra.mxu0 %v1526
        %v1772 = vpop.f32.mrf.mxu0
        %v1773 = vadd.f32 %v1568, %v1772
        %v1774 = vpop.f32.mrf.mxu0
        %v1775 = vadd.f32 %v1572, %v1774
        %v1776 = vpop.f32.mrf.mxu0
        %v1777 = vadd.f32 %v1568, %v1776
        %v1778 = vpop.f32.mrf.mxu0
        %v1779 = vadd.f32 %v1572, %v1778
        %1780 = vmatprep.mubr.bf16.mxu0 0
        %1781 = vmatmul.mubr.bf16.gmra.mxu0 %v1527
        %v1782 = vpop.f32.mrf.mxu0
        %v1783 = vadd.f32 %v1568, %v1782
        %v1784 = vpop.f32.mrf.mxu0
        %v1785 = vadd.f32 %v1572, %v1784
        %v1786 = vpop.f32.mrf.mxu0
        %v1787 = vadd.f32 %v1568, %v1786
        %v1788 = vpop.f32.mrf.mxu0
        %v1789 = vadd.f32 %v1572, %v1788
        %1790 = vmatprep.mubr.bf16.mxu0 0
        %1791 = vmatmul.mubr.bf16.gmra.mxu0 %v1528
        %v1792 = vpop.f32.mrf.mxu0
        %v1793 = vadd.f32 %v1568, %v1792
        %v1794 = vpop.f32.mrf.mxu0
        %v1795 = vadd.f32 %v1572, %v1794
        %v1796 = vpop.f32.mrf.mxu0
        %v1797 = vadd.f32 %v1568, %v1796
        %v1798 = vpop.f32.mrf.mxu0
        %v1799 = vadd.f32 %v1572, %v1798
        %1800 = vmatprep.mubr.bf16.mxu0 0
        %1801 = vmatmul.mubr.bf16.gmra.mxu0 %v1529
        %v1802 = vpop.f32.mrf.mxu0
        %v1803 = vadd.f32 %v1568, %v1802
        %v1804 = vpop.f32.mrf.mxu0
        %v1805 = vadd.f32 %v1572, %v1804
        %v1806 = vpop.f32.mrf.mxu0
        %v1807 = vadd.f32 %v1568, %v1806
        %v1808 = vpop.f32.mrf.mxu0
        %v1809 = vadd.f32 %v1572, %v1808
        %1810 = vmatprep.mubr.bf16.mxu0 0
        %1811 = vmatmul.mubr.bf16.gmra.mxu0 %v1530
        %v1812 = vpop.f32.mrf.mxu0
        %v1813 = vadd.f32 %v1568, %v1812
        %v1814 = vpop.f32.mrf.mxu0
        %v1815 = vadd.f32 %v1572, %v1814
        %v1816 = vpop.f32.mrf.mxu0
        %v1817 = vadd.f32 %v1568, %v1816
        %v1818 = vpop.f32.mrf.mxu0
        %v1819 = vadd.f32 %v1572, %v1818
        %1820 = vdwg.mxu0
        %1821 = vmatprep.subr.bf16.mxu0 0
        %1822 = vmatpush1.bf16.msra.mxu0 %v1683
        %1823 = vmatprep.subr.bf16.mxu0 0
        %1824 = vmatpush1.bf16.msra.mxu0 %v1680
        %1825 = vmatprep.subr.bf16.mxu0 0
        %1826 = vmatpush1.bf16.msra.mxu0 %v1677
        %1827 = vmatprep.subr.bf16.mxu0 0
        %1828 = vmatpush1.bf16.msra.mxu0 %v1674
        %1829 = vmatprep.subr.bf16.mxu0 0
        %1830 = vmatpush1.bf16.msra.mxu0 %v1671
        %1831 = vmatprep.subr.bf16.mxu0 0
        %1832 = vmatpush1.bf16.msra.mxu0 %v1668
        %1833 = vmatprep.subr.bf16.mxu0 0
        %1834 = vmatpush1.bf16.msra.mxu0 %v1665
        %1835 = vmatprep.subr.bf16.mxu0 0
        %1836 = vmatpush1.bf16.msra.mxu0 %v1662
        %1837 = vmatprep.subr.bf16.mxu0 0
        %1838 = vmatpush2.bf16.msra.mxu0 0
        %1839 = vmatprep.subr.bf16.mxu0 0
        %1840 = vmatpush2.bf16.msra.mxu0 0
        %1841 = vmatprep.subr.bf16.mxu0 0
        %1842 = vmatpush2.bf16.msra.mxu0 0
        %1843 = vmatprep.subr.bf16.mxu0 0
        %1844 = vmatpush2.bf16.msra.mxu0 0
        %1845 = vmatprep.subr.bf16.mxu0 0
        %1846 = vmatpush2.bf16.msra.mxu0 0
        %1847 = vmatprep.subr.bf16.mxu0 0
        %1848 = vmatpush2.bf16.msra.mxu0 0
        %1849 = vmatprep.subr.bf16.mxu0 0
        %1850 = vmatpush2.bf16.msra.mxu0 0
        %1851 = vmatprep.subr.bf16.mxu0 0
        %1852 = vmatpush2.bf16.msra.mxu0 0
        %1853 = vmatprep.mubr.bf16.mxu0 0
        %1854 = vmatmul.mubr.bf16.gmra.mxu0 %v1523
        %v1855 = vpop.f32.mrf.mxu0
        %v1856 = vadd.f32 %v1576, %v1855
        %v1857 = vpop.f32.mrf.mxu0
        %v1858 = vpop.f32.mrf.mxu0
        %v1859 = vadd.f32 %v1576, %v1858
        %v1860 = vpop.f32.mrf.mxu0
        %1861 = vmatprep.mubr.bf16.mxu0 0
        %1862 = vmatmul.mubr.bf16.gmra.mxu0 %v1524
        %v1863 = vpop.f32.mrf.mxu0
        %v1864 = vadd.f32 %v1576, %v1863
        %v1865 = vpop.f32.mrf.mxu0
        %v1866 = vpop.f32.mrf.mxu0
        %v1867 = vadd.f32 %v1576, %v1866
        %v1868 = vpop.f32.mrf.mxu0
        %1869 = vmatprep.mubr.bf16.mxu0 0
        %1870 = vmatmul.mubr.bf16.gmra.mxu0 %v1525
        %v1871 = vpop.f32.mrf.mxu0
        %v1872 = vadd.f32 %v1576, %v1871
        %v1873 = vpop.f32.mrf.mxu0
        %v1874 = vpop.f32.mrf.mxu0
        %v1875 = vadd.f32 %v1576, %v1874
        %v1876 = vpop.f32.mrf.mxu0
        %1877 = vmatprep.mubr.bf16.mxu0 0
        %1878 = vmatmul.mubr.bf16.gmra.mxu0 %v1526
        %v1879 = vpop.f32.mrf.mxu0
        %v1880 = vadd.f32 %v1576, %v1879
        %v1881 = vpop.f32.mrf.mxu0
        %v1882 = vpop.f32.mrf.mxu0
        %v1883 = vadd.f32 %v1576, %v1882
        %v1884 = vpop.f32.mrf.mxu0
        %1885 = vmatprep.mubr.bf16.mxu0 0
        %1886 = vmatmul.mubr.bf16.gmra.mxu0 %v1527
        %v1887 = vpop.f32.mrf.mxu0
        %v1888 = vadd.f32 %v1576, %v1887
        %v1889 = vpop.f32.mrf.mxu0
        %v1890 = vpop.f32.mrf.mxu0
        %v1891 = vadd.f32 %v1576, %v1890
        %v1892 = vpop.f32.mrf.mxu0
        %1893 = vmatprep.mubr.bf16.mxu0 0
        %1894 = vmatmul.mubr.bf16.gmra.mxu0 %v1528
        %v1895 = vpop.f32.mrf.mxu0
        %v1896 = vadd.f32 %v1576, %v1895
        %v1897 = vpop.f32.mrf.mxu0
        %v1898 = vpop.f32.mrf.mxu0
        %v1899 = vadd.f32 %v1576, %v1898
        %v1900 = vpop.f32.mrf.mxu0
        %1901 = vmatprep.mubr.bf16.mxu0 0
        %1902 = vmatmul.mubr.bf16.gmra.mxu0 %v1529
        %v1903 = vpop.f32.mrf.mxu0
        %v1904 = vadd.f32 %v1576, %v1903
        %v1905 = vpop.f32.mrf.mxu0
        %v1906 = vpop.f32.mrf.mxu0
        %v1907 = vadd.f32 %v1576, %v1906
        %v1908 = vpop.f32.mrf.mxu0
        %1909 = vmatprep.mubr.bf16.mxu0 0
        %1910 = vmatmul.mubr.bf16.gmra.mxu0 %v1530
        %v1911 = vpop.f32.mrf.mxu0
        %v1912 = vadd.f32 %v1576, %v1911
        %v1913 = vpop.f32.mrf.mxu0
        %v1914 = vpop.f32.mrf.mxu0
        %v1915 = vadd.f32 %v1576, %v1914
        %v1916 = vpop.f32.mrf.mxu0
        %1917 = vdwg.mxu0
        %v1918 = vadd.f32 %v1348, %v1743
        %v1919 = vadd.f32 %v1352, %v1747
        %v1920 = vadd.f32 %v1358, %v1753
        %v1921 = vadd.f32 %v1362, %v1757
        %v1922 = vadd.f32 %v1368, %v1763
        %v1923 = vadd.f32 %v1372, %v1767
        %v1924 = vadd.f32 %v1378, %v1773
        %v1925 = vadd.f32 %v1382, %v1777
        %v1926 = vadd.f32 %v1388, %v1783
        %v1927 = vadd.f32 %v1392, %v1787
        %v1928 = vadd.f32 %v1398, %v1793
        %v1929 = vadd.f32 %v1402, %v1797
        %v1930 = vadd.f32 %v1408, %v1803
        %v1931 = vadd.f32 %v1412, %v1807
        %v1932 = vadd.f32 %v1418, %v1813
        %v1933 = vadd.f32 %v1422, %v1817
        %v1934 = vxor.u32 %v1918, 2147483648
        %v1935 = vxor.u32 %v1919, 2147483648
        %v1936 = vxor.u32 %v1920, 2147483648
        %v1937 = vxor.u32 %v1921, 2147483648
        %v1938 = vxor.u32 %v1922, 2147483648
        %v1939 = vxor.u32 %v1923, 2147483648
        %v1940 = vxor.u32 %v1924, 2147483648
        %v1941 = vxor.u32 %v1925, 2147483648
        %v1942 = vxor.u32 %v1926, 2147483648
        %v1943 = vxor.u32 %v1927, 2147483648
        %v1944 = vxor.u32 %v1928, 2147483648
        %v1945 = vxor.u32 %v1929, 2147483648
        %v1946 = vxor.u32 %v1930, 2147483648
        %v1947 = vxor.u32 %v1931, 2147483648
        %v1948 = vxor.u32 %v1932, 2147483648
        %v1949 = vxor.u32 %v1933, 2147483648
        %v1950 = vmul.f32 %v1934, 1.442695
        %v1951 = vpow.pop %v1950
        %v1952 = vmul.f32 %v1935, 1.442695
        %v1953 = vpow.pop %v1952
        %v1954 = vmul.f32 %v1936, 1.442695
        %v1955 = vpow.pop %v1954
        %v1956 = vmul.f32 %v1937, 1.442695
        %v1957 = vpow.pop %v1956
        %v1958 = vmul.f32 %v1938, 1.442695
        %v1959 = vpow.pop %v1958
        %v1960 = vmul.f32 %v1939, 1.442695
        %v1961 = vpow.pop %v1960
        %v1962 = vmul.f32 %v1940, 1.442695
        %v1963 = vpow.pop %v1962
        %v1964 = vmul.f32 %v1941, 1.442695
        %v1965 = vpow.pop %v1964
        %v1966 = vmul.f32 %v1942, 1.442695
        %v1967 = vpow.pop %v1966
        %v1968 = vmul.f32 %v1943, 1.442695
        %v1969 = vpow.pop %v1968
        %v1970 = vmul.f32 %v1944, 1.442695
        %v1971 = vpow.pop %v1970
        %v1972 = vmul.f32 %v1945, 1.442695
        %v1973 = vpow.pop %v1972
        %v1974 = vmul.f32 %v1946, 1.442695
        %v1975 = vpow.pop %v1974
        %v1976 = vmul.f32 %v1947, 1.442695
        %v1977 = vpow.pop %v1976
        %v1978 = vmul.f32 %v1948, 1.442695
        %v1979 = vpow.pop %v1978
        %v1980 = vmul.f32 %v1949, 1.442695
        %v1981 = vpow.pop %v1980
        %v1982 = vadd.f32 %v1951, 1.0
        %v1983 = vadd.f32 %v1953, 1.0
        %v1984 = vadd.f32 %v1955, 1.0
        %v1985 = vadd.f32 %v1957, 1.0
        %v1986 = vadd.f32 %v1959, 1.0
        %v1987 = vadd.f32 %v1961, 1.0
        %v1988 = vadd.f32 %v1963, 1.0
        %v1989 = vadd.f32 %v1965, 1.0
        %v1990 = vadd.f32 %v1967, 1.0
        %v1991 = vadd.f32 %v1969, 1.0
        %v1992 = vadd.f32 %v1971, 1.0
        %v1993 = vadd.f32 %v1973, 1.0
        %v1994 = vadd.f32 %v1975, 1.0
        %v1995 = vadd.f32 %v1977, 1.0
        %v1996 = vadd.f32 %v1979, 1.0
        %v1997 = vadd.f32 %v1981, 1.0
        %v1998 = vrcp.pop %v1982
        %v1999 = vmul.f32 1.0, %v1998
        %v2000 = vrcp.pop %v1983
        %v2001 = vmul.f32 1.0, %v2000
        %v2002 = vrcp.pop %v1984
        %v2003 = vmul.f32 1.0, %v2002
        %v2004 = vrcp.pop %v1985
        %v2005 = vmul.f32 1.0, %v2004
        %v2006 = vrcp.pop %v1986
        %v2007 = vmul.f32 1.0, %v2006
        %v2008 = vrcp.pop %v1987
        %v2009 = vmul.f32 1.0, %v2008
        %v2010 = vrcp.pop %v1988
        %v2011 = vmul.f32 1.0, %v2010
        %v2012 = vrcp.pop %v1989
        %v2013 = vmul.f32 1.0, %v2012
        %v2014 = vrcp.pop %v1990
        %v2015 = vmul.f32 1.0, %v2014
        %v2016 = vrcp.pop %v1991
        %v2017 = vmul.f32 1.0, %v2016
        %v2018 = vrcp.pop %v1992
        %v2019 = vmul.f32 1.0, %v2018
        %v2020 = vrcp.pop %v1993
        %v2021 = vmul.f32 1.0, %v2020
        %v2022 = vrcp.pop %v1994
        %v2023 = vmul.f32 1.0, %v2022
        %v2024 = vrcp.pop %v1995
        %v2025 = vmul.f32 1.0, %v2024
        %v2026 = vrcp.pop %v1996
        %v2027 = vmul.f32 1.0, %v2026
        %v2028 = vrcp.pop %v1997
        %v2029 = vmul.f32 1.0, %v2028
        %v2030 = vadd.f32 %v1350, %v1745
        %v2031 = vadd.f32 %v1354, %v1749
        %v2032 = vadd.f32 %v1360, %v1755
        %v2033 = vadd.f32 %v1364, %v1759
        %v2034 = vadd.f32 %v1370, %v1765
        %v2035 = vadd.f32 %v1374, %v1769
        %v2036 = vadd.f32 %v1380, %v1775
        %v2037 = vadd.f32 %v1384, %v1779
        %v2038 = vadd.f32 %v1390, %v1785
        %v2039 = vadd.f32 %v1394, %v1789
        %v2040 = vadd.f32 %v1400, %v1795
        %v2041 = vadd.f32 %v1404, %v1799
        %v2042 = vadd.f32 %v1410, %v1805
        %v2043 = vadd.f32 %v1414, %v1809
        %v2044 = vadd.f32 %v1420, %v1815
        %v2045 = vadd.f32 %v1424, %v1819
        %v2046 = vxor.u32 %v2030, 2147483648
        %v2047 = vxor.u32 %v2031, 2147483648
        %v2048 = vxor.u32 %v2032, 2147483648
        %v2049 = vxor.u32 %v2033, 2147483648
        %v2050 = vxor.u32 %v2034, 2147483648
        %v2051 = vxor.u32 %v2035, 2147483648
        %v2052 = vxor.u32 %v2036, 2147483648
        %v2053 = vxor.u32 %v2037, 2147483648
        %v2054 = vxor.u32 %v2038, 2147483648
        %v2055 = vxor.u32 %v2039, 2147483648
        %v2056 = vxor.u32 %v2040, 2147483648
        %v2057 = vxor.u32 %v2041, 2147483648
        %v2058 = vxor.u32 %v2042, 2147483648
        %v2059 = vxor.u32 %v2043, 2147483648
        %v2060 = vxor.u32 %v2044, 2147483648
        %v2061 = vxor.u32 %v2045, 2147483648
        %v2062 = vmul.f32 %v2046, 1.442695
        %v2063 = vpow.pop %v2062
        %v2064 = vmul.f32 %v2047, 1.442695
        %v2065 = vpow.pop %v2064
        %v2066 = vmul.f32 %v2048, 1.442695
        %v2067 = vpow.pop %v2066
        %v2068 = vmul.f32 %v2049, 1.442695
        %v2069 = vpow.pop %v2068
        %v2070 = vmul.f32 %v2050, 1.442695
        %v2071 = vpow.pop %v2070
        %v2072 = vmul.f32 %v2051, 1.442695
        %v2073 = vpow.pop %v2072
        %v2074 = vmul.f32 %v2052, 1.442695
        %v2075 = vpow.pop %v2074
        %v2076 = vmul.f32 %v2053, 1.442695
        %v2077 = vpow.pop %v2076
        %v2078 = vmul.f32 %v2054, 1.442695
        %v2079 = vpow.pop %v2078
        %v2080 = vmul.f32 %v2055, 1.442695
        %v2081 = vpow.pop %v2080
        %v2082 = vmul.f32 %v2056, 1.442695
        %v2083 = vpow.pop %v2082
        %v2084 = vmul.f32 %v2057, 1.442695
        %v2085 = vpow.pop %v2084
        %v2086 = vmul.f32 %v2058, 1.442695
        %v2087 = vpow.pop %v2086
        %v2088 = vmul.f32 %v2059, 1.442695
        %v2089 = vpow.pop %v2088
        %v2090 = vmul.f32 %v2060, 1.442695
        %v2091 = vpow.pop %v2090
        %v2092 = vmul.f32 %v2061, 1.442695
        %v2093 = vpow.pop %v2092
        %v2094 = vadd.f32 %v2063, 1.0
        %v2095 = vadd.f32 %v2065, 1.0
        %v2096 = vadd.f32 %v2067, 1.0
        %v2097 = vadd.f32 %v2069, 1.0
        %v2098 = vadd.f32 %v2071, 1.0
        %v2099 = vadd.f32 %v2073, 1.0
        %v2100 = vadd.f32 %v2075, 1.0
        %v2101 = vadd.f32 %v2077, 1.0
        %v2102 = vadd.f32 %v2079, 1.0
        %v2103 = vadd.f32 %v2081, 1.0
        %v2104 = vadd.f32 %v2083, 1.0
        %v2105 = vadd.f32 %v2085, 1.0
        %v2106 = vadd.f32 %v2087, 1.0
        %v2107 = vadd.f32 %v2089, 1.0
        %v2108 = vadd.f32 %v2091, 1.0
        %v2109 = vadd.f32 %v2093, 1.0
        %v2110 = vrcp.pop %v2094
        %v2111 = vmul.f32 1.0, %v2110
        %v2112 = vrcp.pop %v2095
        %v2113 = vmul.f32 1.0, %v2112
        %v2114 = vrcp.pop %v2096
        %v2115 = vmul.f32 1.0, %v2114
        %v2116 = vrcp.pop %v2097
        %v2117 = vmul.f32 1.0, %v2116
        %v2118 = vrcp.pop %v2098
        %v2119 = vmul.f32 1.0, %v2118
        %v2120 = vrcp.pop %v2099
        %v2121 = vmul.f32 1.0, %v2120
        %v2122 = vrcp.pop %v2100
        %v2123 = vmul.f32 1.0, %v2122
        %v2124 = vrcp.pop %v2101
        %v2125 = vmul.f32 1.0, %v2124
        %v2126 = vrcp.pop %v2102
        %v2127 = vmul.f32 1.0, %v2126
        %v2128 = vrcp.pop %v2103
        %v2129 = vmul.f32 1.0, %v2128
        %v2130 = vrcp.pop %v2104
        %v2131 = vmul.f32 1.0, %v2130
        %v2132 = vrcp.pop %v2105
        %v2133 = vmul.f32 1.0, %v2132
        %v2134 = vrcp.pop %v2106
        %v2135 = vmul.f32 1.0, %v2134
        %v2136 = vrcp.pop %v2107
        %v2137 = vmul.f32 1.0, %v2136
        %v2138 = vrcp.pop %v2108
        %v2139 = vmul.f32 1.0, %v2138
        %v2140 = vrcp.pop %v2109
        %v2141 = vmul.f32 1.0, %v2140
        %v2142 = vmul.f32 %v1999, %v1856
        %v2143 = vmul.f32 %v2001, %v1859
        %v2144 = vmul.f32 %v2003, %v1864
        %v2145 = vmul.f32 %v2005, %v1867
        %v2146 = vmul.f32 %v2007, %v1872
        %v2147 = vmul.f32 %v2009, %v1875
        %v2148 = vmul.f32 %v2011, %v1880
        %v2149 = vmul.f32 %v2013, %v1883
        %v2150 = vmul.f32 %v2015, %v1888
        %v2151 = vmul.f32 %v2017, %v1891
        %v2152 = vmul.f32 %v2019, %v1896
        %v2153 = vmul.f32 %v2021, %v1899
        %v2154 = vmul.f32 %v2023, %v1904
        %v2155 = vmul.f32 %v2025, %v1907
        %v2156 = vmul.f32 %v2027, %v1912
        %v2157 = vmul.f32 %v2029, %v1915
        %v2158 = vadd.f32 %v1461, %v2142
        %v2159 = vadd.f32 %v1464, %v2143
        %v2160 = vadd.f32 %v1469, %v2144
        %v2161 = vadd.f32 %v1472, %v2145
        %v2162 = vadd.f32 %v1477, %v2146
        %v2163 = vadd.f32 %v1480, %v2147
        %v2164 = vadd.f32 %v1485, %v2148
        %v2165 = vadd.f32 %v1488, %v2149
        %v2166 = vadd.f32 %v1493, %v2150
        %v2167 = vadd.f32 %v1496, %v2151
        %v2168 = vadd.f32 %v1501, %v2152
        %v2169 = vadd.f32 %v1504, %v2153
        %v2170 = vadd.f32 %v1509, %v2154
        %v2171 = vadd.f32 %v1512, %v2155
        %v2172 = vadd.f32 %v1517, %v2156
        %v2173 = vadd.f32 %v1520, %v2157
        %v2174 = vtanh.pop %v2158
        %v2175 = vtanh.pop %v2159
        %v2176 = vtanh.pop %v2160
        %v2177 = vtanh.pop %v2161
        %v2178 = vtanh.pop %v2162
        %v2179 = vtanh.pop %v2163
        %v2180 = vtanh.pop %v2164
        %v2181 = vtanh.pop %v2165
        %v2182 = vtanh.pop %v2166
        %v2183 = vtanh.pop %v2167
        %v2184 = vtanh.pop %v2168
        %v2185 = vtanh.pop %v2169
        %v2186 = vtanh.pop %v2170
        %v2187 = vtanh.pop %v2171
        %v2188 = vtanh.pop %v2172
        %v2189 = vtanh.pop %v2173
        %v2190 = vsub.f32 1.0, %v2111
        %v2191 = vsub.f32 1.0, %v2113
        %v2192 = vsub.f32 1.0, %v2115
        %v2193 = vsub.f32 1.0, %v2117
        %v2194 = vsub.f32 1.0, %v2119
        %v2195 = vsub.f32 1.0, %v2121
        %v2196 = vsub.f32 1.0, %v2123
        %v2197 = vsub.f32 1.0, %v2125
        %v2198 = vsub.f32 1.0, %v2127
        %v2199 = vsub.f32 1.0, %v2129
        %v2200 = vsub.f32 1.0, %v2131
        %v2201 = vsub.f32 1.0, %v2133
        %v2202 = vsub.f32 1.0, %v2135
        %v2203 = vsub.f32 1.0, %v2137
        %v2204 = vsub.f32 1.0, %v2139
        %v2205 = vsub.f32 1.0, %v2141
        %v2206 = vmul.f32 %v2190, %v2174
        %v2207 = vmul.f32 %v2191, %v2175
        %v2208 = vmul.f32 %v2192, %v2176
        %v2209 = vmul.f32 %v2193, %v2177
        %v2210 = vmul.f32 %v2194, %v2178
        %v2211 = vmul.f32 %v2195, %v2179
        %v2212 = vmul.f32 %v2196, %v2180
        %v2213 = vmul.f32 %v2197, %v2181
        %v2214 = vmul.f32 %v2198, %v2182
        %v2215 = vmul.f32 %v2199, %v2183
        %v2216 = vmul.f32 %v2200, %v2184
        %v2217 = vmul.f32 %v2201, %v2185
        %v2218 = vmul.f32 %v2202, %v2186
        %v2219 = vmul.f32 %v2203, %v2187
        %v2220 = vmul.f32 %v2204, %v2188
        %v2221 = vmul.f32 %v2205, %v2189
        %v2222 = vmul.f32 %v2111, %v1167
        %v2223 = vmul.f32 %v2113, %v1168
        %v2224 = vmul.f32 %v2115, %v1169
        %v2225 = vmul.f32 %v2117, %v1170
        %v2226 = vmul.f32 %v2119, %v1171
        %v2227 = vmul.f32 %v2121, %v1172
        %v2228 = vmul.f32 %v2123, %v1173
        %v2229 = vmul.f32 %v2125, %v1174
        %v2230 = vmul.f32 %v2127, %v1175
        %v2231 = vmul.f32 %v2129, %v1176
        %v2232 = vmul.f32 %v2131, %v1177
        %v2233 = vmul.f32 %v2133, %v1178
        %v2234 = vmul.f32 %v2135, %v1179
        %v2235 = vmul.f32 %v2137, %v1180
        %v2236 = vmul.f32 %v2139, %v1181
        %v2237 = vmul.f32 %v2141, %v1182
        %v2238 = vadd.f32 %v2206, %v2222
        %v2239 = vadd.f32 %v2207, %v2223
        %v2240 = vadd.f32 %v2208, %v2224
        %v2241 = vadd.f32 %v2209, %v2225
        %v2242 = vadd.f32 %v2210, %v2226
        %v2243 = vadd.f32 %v2211, %v2227
        %v2244 = vadd.f32 %v2212, %v2228
        %v2245 = vadd.f32 %v2213, %v2229
        %v2246 = vadd.f32 %v2214, %v2230
        %v2247 = vadd.f32 %v2215, %v2231
        %v2248 = vadd.f32 %v2216, %v2232
        %v2249 = vadd.f32 %v2217, %v2233
        %v2250 = vadd.f32 %v2218, %v2234
        %v2251 = vadd.f32 %v2219, %v2235
        %v2252 = vadd.f32 %v2220, %v2236
        %v2253 = vadd.f32 %v2221, %v2237
        %v2254 = vmax.f32 %v2238, 0.0
        %v2255 = vmax.f32 %v2239, 0.0
        %v2256 = vmax.f32 %v2240, 0.0
        %v2257 = vmax.f32 %v2241, 0.0
        %v2258 = vmax.f32 %v2242, 0.0
        %v2259 = vmax.f32 %v2243, 0.0
        %v2260 = vmax.f32 %v2244, 0.0
        %v2261 = vmax.f32 %v2245, 0.0
        %v2262 = vmax.f32 %v2246, 0.0
        %v2263 = vmax.f32 %v2247, 0.0
        %v2264 = vmax.f32 %v2248, 0.0
        %v2265 = vmax.f32 %v2249, 0.0
        %v2266 = vmax.f32 %v2250, 0.0
        %v2267 = vmax.f32 %v2251, 0.0
        %v2268 = vmax.f32 %v2252, 0.0
        %v2269 = vmax.f32 %v2253, 0.0
        %2270 = vst [vmem:[%s395] sm:$0xff] %v2254
        %2271 = vst [vmem:[%s395 + $0x8] sm:$0xff] %v2255
        %2272 = vst [vmem:[%s395 + $0x10] sm:$0xff] %v2256
        %2273 = vst [vmem:[%s395 + $0x18] sm:$0xff] %v2257
        %2274 = vst [vmem:[%s395 + $0x20] sm:$0xff] %v2258
        %2275 = vst [vmem:[%s395 + $0x28] sm:$0xff] %v2259
        %2276 = vst [vmem:[%s395 + $0x30] sm:$0xff] %v2260
        %2277 = vst [vmem:[%s395 + $0x38] sm:$0xff] %v2261
        %2278 = vst [vmem:[%s395 + $0x40] sm:$0xff] %v2262
        %2279 = vst [vmem:[%s395 + $0x48] sm:$0xff] %v2263
        %2280 = vst [vmem:[%s395 + $0x50] sm:$0xff] %v2264
        %2281 = vst [vmem:[%s395 + $0x58] sm:$0xff] %v2265
        %2282 = vst [vmem:[%s395 + $0x60] sm:$0xff] %v2266
        %2283 = vst [vmem:[%s395 + $0x68] sm:$0xff] %v2267
        %2284 = vst [vmem:[%s395 + $0x70] sm:$0xff] %v2268
        %2285 = vst [vmem:[%s395 + $0x78] sm:$0xff] %v2269
        %s2286 = sand.u32 %s230, 1
        %s2287 = scalar_lea.sflag [#allocation5], %s2286
        %s2288 = sand.u32 %s230, 1
        %s2289 = smul.addr %s2288, 128
        %s2290 = scalar_lea.vmem [#allocation9], %s2289
        // Predicated region
        $region69: #{tpu_custom_call.1} parent=51 // pred_check
          %p2291 = pneg %p240
        $region70: #{tpu_custom_call.1} parent=51 // pred_check_branch
          %2293 = sbr.rel (%p2291) target = $region72
        $region71: #{tpu_custom_call.1} parent=51 // pred_region
          %s2294 = smul.u32 16, %s33
          %s2296 = ssub.s32 2048, 2048
          %2297 = vsyncadd %s2287, %s2296
          %s2298 = smul.addr %s32, 16
          %s2299 = sadd.s32 %s2294, %s2298
          %s2300 = smul.addr %s2299, 128
          %s2301 = scalar_lea.hbm %s8, %s2300
          %s2302 = sshll.u32 %s2290, 4
          %s2303 = int_to_ptr.vmem [resolvable:$true] %s2302
          %2308 = dma.vmem_to_hbm [thread:$0]  %s2303, 2048, %s2301, %s2287, 128, 128, 8
        $region72: #{tpu_custom_call.1} parent=51 // pred_fallthru
          _
      $region52: #{tpu_custom_call.1} parent=5 // pred_fallthru
        _
      %p2309 = scmp.le.s32.totalorder 2, %s23
      // Predicated region
      $region73: #{tpu_custom_call.1} parent=5 // pred_check
        %p2310 = pneg %p2309
      $region74: #{tpu_custom_call.1} parent=5 // pred_check_branch
        %2312 = sbr.rel (%p2310) target = $region76
      $region75: #{tpu_custom_call.1} parent=5 // pred_region
        %s2313 = ssub.s32 %s23, 2
        // Predicated region
        $region77: #{tpu_custom_call.1} parent=75 // pred_check
          %p2314 = pneg %p246
        $region78: #{tpu_custom_call.1} parent=75 // pred_check_branch
          %2316 = sbr.rel (%p2314) target = $region80
        $region79: #{tpu_custom_call.1} parent=75 // pred_region
          %s2317 = sand.u32 %s231, 1
          %s2318 = scalar_lea.sflag [#allocation5], %s2317
          %s2319 = sand.u32 %s231, 1
          %s2320 = smul.addr %s2319, 128
          %s2321 = scalar_lea.vmem [#allocation9], %s2320
          %2322 = dma.done %s2318, 2048
        $region80: #{tpu_custom_call.1} parent=75 // pred_fallthru
          _
      $region76: #{tpu_custom_call.1} parent=5 // pred_fallthru
        _
    $region6: #{tpu_custom_call.1} parent=1 // loop_footer
      %s27 = sadd.s32 1, %s23
    $region7: #{tpu_custom_call.1} parent=1 // loop_footer_branch
      %22 = sbr.rel target = $region3
    $region8: #{tpu_custom_call.1} parent=1 // loop_exit
      _
    %2323 = vsyncpa [#allocation4], 1
    %s2324 = scalar_lea.sflag [#allocation4], 1
    %2325 = vsyncpa %s2324, 1
    %2326 = vsyncpa [#allocation7], 1
    %s2327 = scalar_lea.sflag [#allocation7], 1
    %2328 = vsyncpa %s2327, 1
    %2329 = vsyncpa [#allocation5], 1
    %s2330 = scalar_lea.sflag [#allocation5], 1
    %2331 = vsyncpa %s2330, 1

</llo_original>
